<compile_context>
chip_gen: v5e
topology: v5e:2x2
jax: 0.10.0
libtpu: 0.0.40
codegen_flags: <defaults>
</compile_context>

<pallas_src>
import functools

import jax
import jax.numpy as jnp
from jax import lax
from jax.experimental import pallas as pl
from jax.experimental.pallas import tpu as pltpu

K = 7           # conv kernel size
PAD = K // 2    # padding = 3


def _round_up(v, m):
    return ((v + m - 1) // m) * m


def spatial_attention_kernel(w_ref, x_ref, o_ref, ext_ref, *, H, W, M):
    # w_ref   : SMEM (2*K*K,) f32 conv weight, flattened as [ci, dy, dx]
    # x_ref   : VMEM block (1, C, H*W)
    # o_ref   : VMEM block (1, C, H*W)
    # ext_ref : VMEM scratch (2, M + H*W + M) f32; row 0 = avg map, row 1 = max
    #           map, with M-lane zero borders on both sides.
    HW = H * W
    C = x_ref.shape[1]

    # ---- one pass over x: channel sum + max; the same value is reused for the
    # final multiply, so x is read from VMEM exactly once. ---------------------
    xf = x_ref[0].astype(jnp.float32)                      # (C, HW), lane-dense
    avg = jnp.sum(xf, axis=0, keepdims=True) * (1.0 / C)   # (1, HW)
    mx = jnp.max(xf, axis=0, keepdims=True)                # (1, HW)

    # ---- stage pooled maps into the zero-bordered flat scratch. --------------
    # Only the two border strips are re-zeroed each step (small, lane-aligned,
    # safe under a "parallel" batch grid); the interior store starts at lane
    # offset M (a multiple of 128) so it is unmasked.
    zero_border = jnp.zeros((2, M), jnp.float32)
    ext_ref[:, 0:M] = zero_border
    ext_ref[:, M + HW:M + HW + M] = zero_border
    ext_ref[0:1, M:M + HW] = avg
    ext_ref[1:2, M:M + HW] = mx
    ext = ext_ref[...]                                     # (2, M + HW + M)

    # ---- hoist all 98 conv weights (SMEM scalar reads) out of the tap loop. --
    wv = [w_ref[i] for i in range(2 * K * K)]

    # Column coordinate of every flattened output position (for edge masking).
    col = lax.broadcasted_iota(jnp.int32, (1, HW), 1) % W

    # ---- 7x7 conv as 49 static lane-slices of the flat scratch ---------------
    # out[y, x] = sum_{dy,dx} w[ci,dy,dx] * img[ci, y+dy-3, x+dx-3]
    #   row out-of-range    -> lands in the zero border of `ext`
    #   column out-of-range -> removed by the per-dx mask
    # One slice serves both pooled channels; the 7 per-dx partial accumulators
    # are independent chains (good VALU co-issue) and are tree-summed at the end.
    parts = []
    for dx in range(K):
        part = jnp.zeros((1, HW), jnp.float32)
        for dy in range(K):
            off = M + (dy - PAD) * W + (dx - PAD)
            tap = ext[:, off:off + HW]                     # (2, HW)
            w_avg = wv[0 * K * K + dy * K + dx]
            w_max = wv[1 * K * K + dy * K + dx]
            part = part + (w_avg * tap[0:1, :] + w_max * tap[1:2, :])
        valid = (col >= PAD - dx) & (col < W + PAD - dx)
        parts.append(jnp.where(valid, part, 0.0))

    while len(parts) > 1:                                  # balanced tree sum
        nxt = [parts[i] + parts[i + 1] for i in range(0, len(parts) - 1, 2)]
        if len(parts) % 2:
            nxt.append(parts[-1])
        parts = nxt
    conv = parts[0]                                        # (1, HW)

    attn = jax.nn.sigmoid(conv)                            # (1, HW)
    # Lane-dense broadcast multiply + full-width (unmasked) store.
    o_ref[0] = (xf * attn).astype(o_ref.dtype)


def spatial_attention(x, w):
    """x: (B, C, H, W) float32, w: (1, 2, K, K) float32 conv weight (no bias)."""
    B, C, H, W = x.shape
    HW = H * W
    # Zero margin for the flat conv scratch: must cover PAD rows + PAD columns
    # of flat offset; rounded to 128 so the interior store is lane-aligned.
    M = _round_up(PAD * W + PAD, 128)
    assert M >= PAD * W + PAD

    w_flat = w.reshape(-1).astype(jnp.float32)             # (2*K*K,) -> SMEM
    x_flat = x.reshape(B, C, HW)                           # lane-dense view (free)

    kernel = functools.partial(spatial_attention_kernel, H=H, W=W, M=M)

    grid_spec = pltpu.PrefetchScalarGridSpec(
        num_scalar_prefetch=1,
        grid=(B,),
        in_specs=[pl.BlockSpec((1, C, HW), lambda b, w_sref: (b, 0, 0))],
        out_specs=pl.BlockSpec((1, C, HW), lambda b, w_sref: (b, 0, 0)),
        scratch_shapes=[pltpu.VMEM((2, M + HW + M), jnp.float32)],
    )

    # VMEM budget: double-buffered in/out blocks + scratch + headroom.
    block_bytes = C * HW * x.dtype.itemsize
    scratch_bytes = 2 * (M + HW + M) * 4
    vmem_limit = min(100 * 1024 * 1024,
                     max(8 * 1024 * 1024, 5 * block_bytes + scratch_bytes))

    out = pl.pallas_call(
        kernel,
        out_shape=jax.ShapeDtypeStruct((B, C, HW), x.dtype),
        grid_spec=grid_spec,
        compiler_params=pltpu.CompilerParams(
            dimension_semantics=("parallel",),   # batch items are independent
            vmem_limit_bytes=vmem_limit,
        ),
        # input 0 is the scalar-prefetch weight; input 1 (x_flat) aliases output 0.
        input_output_aliases={1: 0},
    )(w_flat, x_flat)
    return out.reshape(B, C, H, W)


def spatial_attention_ref(x, w):
    """Pure-JAX reference matching the PyTorch forward."""
    avg = jnp.mean(x, axis=1, keepdims=True)
    mx = jnp.max(x, axis=1, keepdims=True)
    cat = jnp.concatenate([avg, mx], axis=1)               # (B, 2, H, W)
    out = lax.conv_general_dilated(
        cat, w, window_strides=(1, 1),
        padding=((PAD, PAD), (PAD, PAD)),
        dimension_numbers=("NCHW", "OIHW", "NCHW"))
    return x * jax.nn.sigmoid(out)


if __name__ == "__main__":
    B, C, H, W = 2, 4, 16, 16
    key = jax.random.PRNGKey(0)
    kx, kw = jax.random.split(key)
    x = jax.random.normal(kx, (B, C, H, W), dtype=jnp.float32)
    # Deterministic synthetic conv weight; matches nn.Conv2d(2, 1, 7): (1, 2, 7, 7)
    w = 0.1 * jax.random.normal(kw, (1, 2, K, K), dtype=jnp.float32)

    ref = spatial_attention_ref(x, w)

    out = spatial_attention(x, w)
    out = jax.block_until_ready(out)

    assert out.shape == (B, C, H, W)
    max_err = jnp.max(jnp.abs(out - ref))
    assert jnp.allclose(out, ref, atol=1e-5, rtol=1e-5), f"max abs err {max_err}"
    print("KERNEL_OK")
</pallas_src>

<mosaic_0001>
module attributes {stable_mosaic.version = 11 : i64} {
  func.func @spatial_attention_kernel(%arg0: i32, %arg1: memref<98xf32, #tpu.memory_space<smem>>, %arg2: memref<1x4x256xf32, #tpu.memory_space<vmem>>, %arg3: memref<1x4x256xf32, #tpu.memory_space<vmem>>, %arg4: memref<2x512xf32, #tpu.memory_space<vmem>>) attributes {dimension_semantics = [#tpu.dimension_semantics<parallel>], iteration_bounds = array<i64: 2>, scalar_prefetch = 1 : i64, scratch_operands = 1 : i64, tpu.core_type = #tpu.core_type<tc>, window_params = [{transform_indices = @transform_0, window_bounds = array<i64: 1, 4, 256>}, {transform_indices = @transform_1, window_bounds = array<i64: 1, 4, 256>}]} {
    %c0 = arith.constant 0 : index
    %c0_0 = arith.constant 0 : index
    %c0_1 = arith.constant 0 : index
    %0 = vector.load %arg2[%c0, %c0_0, %c0_1] : memref<1x4x256xf32, #tpu.memory_space<vmem>>, vector<1x4x256xf32>
    %1 = vector.shape_cast %0 : vector<1x4x256xf32> to vector<4x256xf32>
    %cst = arith.constant dense<0.000000e+00> : vector<256xf32>
    %2 = vector.multi_reduction <add>, %1, %cst [0] : vector<4x256xf32> to vector<256xf32>
    %3 = vector.shape_cast %2 : vector<256xf32> to vector<1x256xf32>
    %cst_2 = arith.constant 2.500000e-01 : f32
    %4 = vector.broadcast %cst_2 : f32 to vector<1x256xf32>
    %5 = arith.mulf %3, %4 : vector<1x256xf32>
    %cst_3 = arith.constant dense<0xFF800000> : vector<256xf32>
    %6 = vector.multi_reduction <maximumf>, %1, %cst_3 [0] : vector<4x256xf32> to vector<256xf32>
    %7 = vector.shape_cast %6 : vector<256xf32> to vector<1x256xf32>
    %cst_4 = arith.constant 0.000000e+00 : f32
    %8 = vector.broadcast %cst_4 : f32 to vector<2x128xf32>
    %c0_5 = arith.constant 0 : index
    %c0_6 = arith.constant 0 : index
    %9 = vector.load %arg4[%c0_5, %c0_6] : memref<2x512xf32, #tpu.memory_space<vmem>>, vector<2x128xf32>
    tpu.vector_store %arg4[%c0_5, %c0_6], %8 {strides = array<i32>} : memref<2x512xf32, #tpu.memory_space<vmem>>, vector<2x128xf32>,
    %c0_7 = arith.constant 0 : index
    %c384 = arith.constant 384 : index
    %10 = vector.load %arg4[%c0_7, %c384] : memref<2x512xf32, #tpu.memory_space<vmem>>, vector<2x128xf32>
    tpu.vector_store %arg4[%c0_7, %c384], %8 {strides = array<i32>} : memref<2x512xf32, #tpu.memory_space<vmem>>, vector<2x128xf32>,
    %c0_8 = arith.constant 0 : index
    %c128 = arith.constant 128 : index
    %11 = vector.load %arg4[%c0_8, %c128] : memref<2x512xf32, #tpu.memory_space<vmem>>, vector<1x256xf32>
    tpu.vector_store %arg4[%c0_8, %c128], %5 {strides = array<i32>} : memref<2x512xf32, #tpu.memory_space<vmem>>, vector<1x256xf32>,
    %c1 = arith.constant 1 : index
    %c128_9 = arith.constant 128 : index
    %12 = vector.load %arg4[%c1, %c128_9] : memref<2x512xf32, #tpu.memory_space<vmem>>, vector<1x256xf32>
    tpu.vector_store %arg4[%c1, %c128_9], %7 {strides = array<i32>} : memref<2x512xf32, #tpu.memory_space<vmem>>, vector<1x256xf32>,
    %c0_10 = arith.constant 0 : index
    %c0_11 = arith.constant 0 : index
    %13 = vector.load %arg4[%c0_10, %c0_11] : memref<2x512xf32, #tpu.memory_space<vmem>>, vector<2x512xf32>
    %c0_12 = arith.constant 0 : index
    %14 = memref.load %arg1[%c0_12] : memref<98xf32, #tpu.memory_space<smem>>
    %c1_13 = arith.constant 1 : index
    %15 = memref.load %arg1[%c1_13] : memref<98xf32, #tpu.memory_space<smem>>
    %c2 = arith.constant 2 : index
    %16 = memref.load %arg1[%c2] : memref<98xf32, #tpu.memory_space<smem>>
    %c3 = arith.constant 3 : index
    %17 = memref.load %arg1[%c3] : memref<98xf32, #tpu.memory_space<smem>>
    %c4 = arith.constant 4 : index
    %18 = memref.load %arg1[%c4] : memref<98xf32, #tpu.memory_space<smem>>
    %c5 = arith.constant 5 : index
    %19 = memref.load %arg1[%c5] : memref<98xf32, #tpu.memory_space<smem>>
    %c6 = arith.constant 6 : index
    %20 = memref.load %arg1[%c6] : memref<98xf32, #tpu.memory_space<smem>>
    %c7 = arith.constant 7 : index
    %21 = memref.load %arg1[%c7] : memref<98xf32, #tpu.memory_space<smem>>
    %c8 = arith.constant 8 : index
    %22 = memref.load %arg1[%c8] : memref<98xf32, #tpu.memory_space<smem>>
    %c9 = arith.constant 9 : index
    %23 = memref.load %arg1[%c9] : memref<98xf32, #tpu.memory_space<smem>>
    %c10 = arith.constant 10 : index
    %24 = memref.load %arg1[%c10] : memref<98xf32, #tpu.memory_space<smem>>
    %c11 = arith.constant 11 : index
    %25 = memref.load %arg1[%c11] : memref<98xf32, #tpu.memory_space<smem>>
    %c12 = arith.constant 12 : index
    %26 = memref.load %arg1[%c12] : memref<98xf32, #tpu.memory_space<smem>>
    %c13 = arith.constant 13 : index
    %27 = memref.load %arg1[%c13] : memref<98xf32, #tpu.memory_space<smem>>
    %c14 = arith.constant 14 : index
    %28 = memref.load %arg1[%c14] : memref<98xf32, #tpu.memory_space<smem>>
    %c15 = arith.constant 15 : index
    %29 = memref.load %arg1[%c15] : memref<98xf32, #tpu.memory_space<smem>>
    %c16 = arith.constant 16 : index
    %30 = memref.load %arg1[%c16] : memref<98xf32, #tpu.memory_space<smem>>
    %c17 = arith.constant 17 : index
    %31 = memref.load %arg1[%c17] : memref<98xf32, #tpu.memory_space<smem>>
    %c18 = arith.constant 18 : index
    %32 = memref.load %arg1[%c18] : memref<98xf32, #tpu.memory_space<smem>>
    %c19 = arith.constant 19 : index
    %33 = memref.load %arg1[%c19] : memref<98xf32, #tpu.memory_space<smem>>
    %c20 = arith.constant 20 : index
    %34 = memref.load %arg1[%c20] : memref<98xf32, #tpu.memory_space<smem>>
    %c21 = arith.constant 21 : index
    %35 = memref.load %arg1[%c21] : memref<98xf32, #tpu.memory_space<smem>>
    %c22 = arith.constant 22 : index
    %36 = memref.load %arg1[%c22] : memref<98xf32, #tpu.memory_space<smem>>
    %c23 = arith.constant 23 : index
    %37 = memref.load %arg1[%c23] : memref<98xf32, #tpu.memory_space<smem>>
    %c24 = arith.constant 24 : index
    %38 = memref.load %arg1[%c24] : memref<98xf32, #tpu.memory_space<smem>>
    %c25 = arith.constant 25 : index
    %39 = memref.load %arg1[%c25] : memref<98xf32, #tpu.memory_space<smem>>
    %c26 = arith.constant 26 : index
    %40 = memref.load %arg1[%c26] : memref<98xf32, #tpu.memory_space<smem>>
    %c27 = arith.constant 27 : index
    %41 = memref.load %arg1[%c27] : memref<98xf32, #tpu.memory_space<smem>>
    %c28 = arith.constant 28 : index
    %42 = memref.load %arg1[%c28] : memref<98xf32, #tpu.memory_space<smem>>
    %c29 = arith.constant 29 : index
    %43 = memref.load %arg1[%c29] : memref<98xf32, #tpu.memory_space<smem>>
    %c30 = arith.constant 30 : index
    %44 = memref.load %arg1[%c30] : memref<98xf32, #tpu.memory_space<smem>>
    %c31 = arith.constant 31 : index
    %45 = memref.load %arg1[%c31] : memref<98xf32, #tpu.memory_space<smem>>
    %c32 = arith.constant 32 : index
    %46 = memref.load %arg1[%c32] : memref<98xf32, #tpu.memory_space<smem>>
    %c33 = arith.constant 33 : index
    %47 = memref.load %arg1[%c33] : memref<98xf32, #tpu.memory_space<smem>>
    %c34 = arith.constant 34 : index
    %48 = memref.load %arg1[%c34] : memref<98xf32, #tpu.memory_space<smem>>
    %c35 = arith.constant 35 : index
    %49 = memref.load %arg1[%c35] : memref<98xf32, #tpu.memory_space<smem>>
    %c36 = arith.constant 36 : index
    %50 = memref.load %arg1[%c36] : memref<98xf32, #tpu.memory_space<smem>>
    %c37 = arith.constant 37 : index
    %51 = memref.load %arg1[%c37] : memref<98xf32, #tpu.memory_space<smem>>
    %c38 = arith.constant 38 : index
    %52 = memref.load %arg1[%c38] : memref<98xf32, #tpu.memory_space<smem>>
    %c39 = arith.constant 39 : index
    %53 = memref.load %arg1[%c39] : memref<98xf32, #tpu.memory_space<smem>>
    %c40 = arith.constant 40 : index
    %54 = memref.load %arg1[%c40] : memref<98xf32, #tpu.memory_space<smem>>
    %c41 = arith.constant 41 : index
    %55 = memref.load %arg1[%c41] : memref<98xf32, #tpu.memory_space<smem>>
    %c42 = arith.constant 42 : index
    %56 = memref.load %arg1[%c42] : memref<98xf32, #tpu.memory_space<smem>>
    %c43 = arith.constant 43 : index
    %57 = memref.load %arg1[%c43] : memref<98xf32, #tpu.memory_space<smem>>
    %c44 = arith.constant 44 : index
    %58 = memref.load %arg1[%c44] : memref<98xf32, #tpu.memory_space<smem>>
    %c45 = arith.constant 45 : index
    %59 = memref.load %arg1[%c45] : memref<98xf32, #tpu.memory_space<smem>>
    %c46 = arith.constant 46 : index
    %60 = memref.load %arg1[%c46] : memref<98xf32, #tpu.memory_space<smem>>
    %c47 = arith.constant 47 : index
    %61 = memref.load %arg1[%c47] : memref<98xf32, #tpu.memory_space<smem>>
    %c48 = arith.constant 48 : index
    %62 = memref.load %arg1[%c48] : memref<98xf32, #tpu.memory_space<smem>>
    %c49 = arith.constant 49 : index
    %63 = memref.load %arg1[%c49] : memref<98xf32, #tpu.memory_space<smem>>
    %c50 = arith.constant 50 : index
    %64 = memref.load %arg1[%c50] : memref<98xf32, #tpu.memory_space<smem>>
    %c51 = arith.constant 51 : index
    %65 = memref.load %arg1[%c51] : memref<98xf32, #tpu.memory_space<smem>>
    %c52 = arith.constant 52 : index
    %66 = memref.load %arg1[%c52] : memref<98xf32, #tpu.memory_space<smem>>
    %c53 = arith.constant 53 : index
    %67 = memref.load %arg1[%c53] : memref<98xf32, #tpu.memory_space<smem>>
    %c54 = arith.constant 54 : index
    %68 = memref.load %arg1[%c54] : memref<98xf32, #tpu.memory_space<smem>>
    %c55 = arith.constant 55 : index
    %69 = memref.load %arg1[%c55] : memref<98xf32, #tpu.memory_space<smem>>
    %c56 = arith.constant 56 : index
    %70 = memref.load %arg1[%c56] : memref<98xf32, #tpu.memory_space<smem>>
    %c57 = arith.constant 57 : index
    %71 = memref.load %arg1[%c57] : memref<98xf32, #tpu.memory_space<smem>>
    %c58 = arith.constant 58 : index
    %72 = memref.load %arg1[%c58] : memref<98xf32, #tpu.memory_space<smem>>
    %c59 = arith.constant 59 : index
    %73 = memref.load %arg1[%c59] : memref<98xf32, #tpu.memory_space<smem>>
    %c60 = arith.constant 60 : index
    %74 = memref.load %arg1[%c60] : memref<98xf32, #tpu.memory_space<smem>>
    %c61 = arith.constant 61 : index
    %75 = memref.load %arg1[%c61] : memref<98xf32, #tpu.memory_space<smem>>
    %c62 = arith.constant 62 : index
    %76 = memref.load %arg1[%c62] : memref<98xf32, #tpu.memory_space<smem>>
    %c63 = arith.constant 63 : index
    %77 = memref.load %arg1[%c63] : memref<98xf32, #tpu.memory_space<smem>>
    %c64 = arith.constant 64 : index
    %78 = memref.load %arg1[%c64] : memref<98xf32, #tpu.memory_space<smem>>
    %c65 = arith.constant 65 : index
    %79 = memref.load %arg1[%c65] : memref<98xf32, #tpu.memory_space<smem>>
    %c66 = arith.constant 66 : index
    %80 = memref.load %arg1[%c66] : memref<98xf32, #tpu.memory_space<smem>>
    %c67 = arith.constant 67 : index
    %81 = memref.load %arg1[%c67] : memref<98xf32, #tpu.memory_space<smem>>
    %c68 = arith.constant 68 : index
    %82 = memref.load %arg1[%c68] : memref<98xf32, #tpu.memory_space<smem>>
    %c69 = arith.constant 69 : index
    %83 = memref.load %arg1[%c69] : memref<98xf32, #tpu.memory_space<smem>>
    %c70 = arith.constant 70 : index
    %84 = memref.load %arg1[%c70] : memref<98xf32, #tpu.memory_space<smem>>
    %c71 = arith.constant 71 : index
    %85 = memref.load %arg1[%c71] : memref<98xf32, #tpu.memory_space<smem>>
    %c72 = arith.constant 72 : index
    %86 = memref.load %arg1[%c72] : memref<98xf32, #tpu.memory_space<smem>>
    %c73 = arith.constant 73 : index
    %87 = memref.load %arg1[%c73] : memref<98xf32, #tpu.memory_space<smem>>
    %c74 = arith.constant 74 : index
    %88 = memref.load %arg1[%c74] : memref<98xf32, #tpu.memory_space<smem>>
    %c75 = arith.constant 75 : index
    %89 = memref.load %arg1[%c75] : memref<98xf32, #tpu.memory_space<smem>>
    %c76 = arith.constant 76 : index
    %90 = memref.load %arg1[%c76] : memref<98xf32, #tpu.memory_space<smem>>
    %c77 = arith.constant 77 : index
    %91 = memref.load %arg1[%c77] : memref<98xf32, #tpu.memory_space<smem>>
    %c78 = arith.constant 78 : index
    %92 = memref.load %arg1[%c78] : memref<98xf32, #tpu.memory_space<smem>>
    %c79 = arith.constant 79 : index
    %93 = memref.load %arg1[%c79] : memref<98xf32, #tpu.memory_space<smem>>
    %c80 = arith.constant 80 : index
    %94 = memref.load %arg1[%c80] : memref<98xf32, #tpu.memory_space<smem>>
    %c81 = arith.constant 81 : index
    %95 = memref.load %arg1[%c81] : memref<98xf32, #tpu.memory_space<smem>>
    %c82 = arith.constant 82 : index
    %96 = memref.load %arg1[%c82] : memref<98xf32, #tpu.memory_space<smem>>
    %c83 = arith.constant 83 : index
    %97 = memref.load %arg1[%c83] : memref<98xf32, #tpu.memory_space<smem>>
    %c84 = arith.constant 84 : index
    %98 = memref.load %arg1[%c84] : memref<98xf32, #tpu.memory_space<smem>>
    %c85 = arith.constant 85 : index
    %99 = memref.load %arg1[%c85] : memref<98xf32, #tpu.memory_space<smem>>
    %c86 = arith.constant 86 : index
    %100 = memref.load %arg1[%c86] : memref<98xf32, #tpu.memory_space<smem>>
    %c87 = arith.constant 87 : index
    %101 = memref.load %arg1[%c87] : memref<98xf32, #tpu.memory_space<smem>>
    %c88 = arith.constant 88 : index
    %102 = memref.load %arg1[%c88] : memref<98xf32, #tpu.memory_space<smem>>
    %c89 = arith.constant 89 : index
    %103 = memref.load %arg1[%c89] : memref<98xf32, #tpu.memory_space<smem>>
    %c90 = arith.constant 90 : index
    %104 = memref.load %arg1[%c90] : memref<98xf32, #tpu.memory_space<smem>>
    %c91 = arith.constant 91 : index
    %105 = memref.load %arg1[%c91] : memref<98xf32, #tpu.memory_space<smem>>
    %c92 = arith.constant 92 : index
    %106 = memref.load %arg1[%c92] : memref<98xf32, #tpu.memory_space<smem>>
    %c93 = arith.constant 93 : index
    %107 = memref.load %arg1[%c93] : memref<98xf32, #tpu.memory_space<smem>>
    %c94 = arith.constant 94 : index
    %108 = memref.load %arg1[%c94] : memref<98xf32, #tpu.memory_space<smem>>
    %c95 = arith.constant 95 : index
    %109 = memref.load %arg1[%c95] : memref<98xf32, #tpu.memory_space<smem>>
    %c96 = arith.constant 96 : index
    %110 = memref.load %arg1[%c96] : memref<98xf32, #tpu.memory_space<smem>>
    %c97 = arith.constant 97 : index
    %111 = memref.load %arg1[%c97] : memref<98xf32, #tpu.memory_space<smem>>
    %112 = tpu.iota {dimensions = array<i32: 1>} : vector<1x256xi32>
    %c16_i32 = arith.constant 16 : i32
    %c0_i32 = arith.constant 0 : i32
    %113 = arith.cmpi eq, %c16_i32, %c0_i32 : i32
    %c1_i32 = arith.constant 1 : i32
    %114 = arith.select %113, %c1_i32, %c16_i32 : i32
    %115 = vector.broadcast %114 : i32 to vector<1x256xi32>
    %116 = arith.remsi %112, %115 : vector<1x256xi32>
    %c0_i32_14 = arith.constant 0 : i32
    %117 = vector.broadcast %c0_i32_14 : i32 to vector<1x256xi32>
    %118 = arith.cmpi ne, %116, %117 : vector<1x256xi32>
    %c0_i32_15 = arith.constant 0 : i32
    %119 = vector.broadcast %c0_i32_15 : i32 to vector<1x256xi32>
    %120 = arith.cmpi slt, %116, %119 : vector<1x256xi32>
    %c0_i32_16 = arith.constant 0 : i32
    %121 = arith.cmpi slt, %114, %c0_i32_16 : i32
    %122 = vector.broadcast %121 : i1 to vector<1x256xi1>
    %123 = vector.broadcast %122 : vector<1x256xi1> to vector<1x256xi1>
    %124 = arith.xori %120, %123 : vector<1x256xi1>
    %125 = arith.andi %124, %118 : vector<1x256xi1>
    %126 = vector.broadcast %114 : i32 to vector<1x256xi32>
    %127 = arith.addi %116, %126 : vector<1x256xi32>
    %128 = arith.select %125, %127, %116 : vector<1x256xi1>, vector<1x256xi32>
    %cst_17 = arith.constant 0.000000e+00 : f32
    %129 = vector.broadcast %cst_17 : f32 to vector<1x256xf32>
    %130 = vector.extract_strided_slice %13 {offsets = [0, 77], sizes = [2, 256], strides = [1, 1]} : vector<2x512xf32> to vector<2x256xf32>
    %131 = vector.extract_strided_slice %130 {offsets = [0, 0], sizes = [1, 256], strides = [1, 1]} : vector<2x256xf32> to vector<1x256xf32>
    %132 = vector.broadcast %14 : f32 to vector<1x256xf32>
    %133 = arith.mulf %132, %131 : vector<1x256xf32>
    %134 = vector.extract_strided_slice %130 {offsets = [1, 0], sizes = [1, 256], strides = [1, 1]} : vector<2x256xf32> to vector<1x256xf32>
    %135 = vector.broadcast %63 : f32 to vector<1x256xf32>
    %136 = arith.mulf %135, %134 : vector<1x256xf32>
    %137 = arith.addf %133, %136 : vector<1x256xf32>
    %138 = arith.addf %129, %137 : vector<1x256xf32>
    %139 = vector.extract_strided_slice %13 {offsets = [0, 93], sizes = [2, 256], strides = [1, 1]} : vector<2x512xf32> to vector<2x256xf32>
    %140 = vector.extract_strided_slice %139 {offsets = [0, 0], sizes = [1, 256], strides = [1, 1]} : vector<2x256xf32> to vector<1x256xf32>
    %141 = vector.broadcast %21 : f32 to vector<1x256xf32>
    %142 = arith.mulf %141, %140 : vector<1x256xf32>
    %143 = vector.extract_strided_slice %139 {offsets = [1, 0], sizes = [1, 256], strides = [1, 1]} : vector<2x256xf32> to vector<1x256xf32>
    %144 = vector.broadcast %70 : f32 to vector<1x256xf32>
    %145 = arith.mulf %144, %143 : vector<1x256xf32>
    %146 = arith.addf %142, %145 : vector<1x256xf32>
    %147 = arith.addf %138, %146 : vector<1x256xf32>
    %148 = vector.extract_strided_slice %13 {offsets = [0, 109], sizes = [2, 256], strides = [1, 1]} : vector<2x512xf32> to vector<2x256xf32>
    %149 = vector.extract_strided_slice %148 {offsets = [0, 0], sizes = [1, 256], strides = [1, 1]} : vector<2x256xf32> to vector<1x256xf32>
    %150 = vector.broadcast %28 : f32 to vector<1x256xf32>
    %151 = arith.mulf %150, %149 : vector<1x256xf32>
    %152 = vector.extract_strided_slice %148 {offsets = [1, 0], sizes = [1, 256], strides = [1, 1]} : vector<2x256xf32> to vector<1x256xf32>
    %153 = vector.broadcast %77 : f32 to vector<1x256xf32>
    %154 = arith.mulf %153, %152 : vector<1x256xf32>
    %155 = arith.addf %151, %154 : vector<1x256xf32>
    %156 = arith.addf %147, %155 : vector<1x256xf32>
    %157 = vector.extract_strided_slice %13 {offsets = [0, 125], sizes = [2, 256], strides = [1, 1]} : vector<2x512xf32> to vector<2x256xf32>
    %158 = vector.extract_strided_slice %157 {offsets = [0, 0], sizes = [1, 256], strides = [1, 1]} : vector<2x256xf32> to vector<1x256xf32>
    %159 = vector.broadcast %35 : f32 to vector<1x256xf32>
    %160 = arith.mulf %159, %158 : vector<1x256xf32>
    %161 = vector.extract_strided_slice %157 {offsets = [1, 0], sizes = [1, 256], strides = [1, 1]} : vector<2x256xf32> to vector<1x256xf32>
    %162 = vector.broadcast %84 : f32 to vector<1x256xf32>
    %163 = arith.mulf %162, %161 : vector<1x256xf32>
    %164 = arith.addf %160, %163 : vector<1x256xf32>
    %165 = arith.addf %156, %164 : vector<1x256xf32>
    %166 = vector.extract_strided_slice %13 {offsets = [0, 141], sizes = [2, 256], strides = [1, 1]} : vector<2x512xf32> to vector<2x256xf32>
    %167 = vector.extract_strided_slice %166 {offsets = [0, 0], sizes = [1, 256], strides = [1, 1]} : vector<2x256xf32> to vector<1x256xf32>
    %168 = vector.broadcast %42 : f32 to vector<1x256xf32>
    %169 = arith.mulf %168, %167 : vector<1x256xf32>
    %170 = vector.extract_strided_slice %166 {offsets = [1, 0], sizes = [1, 256], strides = [1, 1]} : vector<2x256xf32> to vector<1x256xf32>
    %171 = vector.broadcast %91 : f32 to vector<1x256xf32>
    %172 = arith.mulf %171, %170 : vector<1x256xf32>
    %173 = arith.addf %169, %172 : vector<1x256xf32>
    %174 = arith.addf %165, %173 : vector<1x256xf32>
    %175 = vector.extract_strided_slice %13 {offsets = [0, 157], sizes = [2, 256], strides = [1, 1]} : vector<2x512xf32> to vector<2x256xf32>
    %176 = vector.extract_strided_slice %175 {offsets = [0, 0], sizes = [1, 256], strides = [1, 1]} : vector<2x256xf32> to vector<1x256xf32>
    %177 = vector.broadcast %49 : f32 to vector<1x256xf32>
    %178 = arith.mulf %177, %176 : vector<1x256xf32>
    %179 = vector.extract_strided_slice %175 {offsets = [1, 0], sizes = [1, 256], strides = [1, 1]} : vector<2x256xf32> to vector<1x256xf32>
    %180 = vector.broadcast %98 : f32 to vector<1x256xf32>
    %181 = arith.mulf %180, %179 : vector<1x256xf32>
    %182 = arith.addf %178, %181 : vector<1x256xf32>
    %183 = arith.addf %174, %182 : vector<1x256xf32>
    %184 = vector.extract_strided_slice %13 {offsets = [0, 173], sizes = [2, 256], strides = [1, 1]} : vector<2x512xf32> to vector<2x256xf32>
    %185 = vector.extract_strided_slice %184 {offsets = [0, 0], sizes = [1, 256], strides = [1, 1]} : vector<2x256xf32> to vector<1x256xf32>
    %186 = vector.broadcast %56 : f32 to vector<1x256xf32>
    %187 = arith.mulf %186, %185 : vector<1x256xf32>
    %188 = vector.extract_strided_slice %184 {offsets = [1, 0], sizes = [1, 256], strides = [1, 1]} : vector<2x256xf32> to vector<1x256xf32>
    %189 = vector.broadcast %105 : f32 to vector<1x256xf32>
    %190 = arith.mulf %189, %188 : vector<1x256xf32>
    %191 = arith.addf %187, %190 : vector<1x256xf32>
    %192 = arith.addf %183, %191 : vector<1x256xf32>
    %c3_i32 = arith.constant 3 : i32
    %193 = vector.broadcast %c3_i32 : i32 to vector<1x256xi32>
    %194 = arith.cmpi sge, %128, %193 : vector<1x256xi32>
    %c19_i32 = arith.constant 19 : i32
    %195 = vector.broadcast %c19_i32 : i32 to vector<1x256xi32>
    %196 = arith.cmpi slt, %128, %195 : vector<1x256xi32>
    %197 = arith.andi %194, %196 : vector<1x256xi1>
    %cst_18 = arith.constant 0.000000e+00 : f32
    %198 = vector.broadcast %cst_18 : f32 to vector<1x256xf32>
    %199 = arith.select %197, %192, %198 : vector<1x256xi1>, vector<1x256xf32>
    %cst_19 = arith.constant 0.000000e+00 : f32
    %200 = vector.broadcast %cst_19 : f32 to vector<1x256xf32>
    %201 = vector.extract_strided_slice %13 {offsets = [0, 78], sizes = [2, 256], strides = [1, 1]} : vector<2x512xf32> to vector<2x256xf32>
    %202 = vector.extract_strided_slice %201 {offsets = [0, 0], sizes = [1, 256], strides = [1, 1]} : vector<2x256xf32> to vector<1x256xf32>
    %203 = vector.broadcast %15 : f32 to vector<1x256xf32>
    %204 = arith.mulf %203, %202 : vector<1x256xf32>
    %205 = vector.extract_strided_slice %201 {offsets = [1, 0], sizes = [1, 256], strides = [1, 1]} : vector<2x256xf32> to vector<1x256xf32>
    %206 = vector.broadcast %64 : f32 to vector<1x256xf32>
    %207 = arith.mulf %206, %205 : vector<1x256xf32>
    %208 = arith.addf %204, %207 : vector<1x256xf32>
    %209 = arith.addf %200, %208 : vector<1x256xf32>
    %210 = vector.extract_strided_slice %13 {offsets = [0, 94], sizes = [2, 256], strides = [1, 1]} : vector<2x512xf32> to vector<2x256xf32>
    %211 = vector.extract_strided_slice %210 {offsets = [0, 0], sizes = [1, 256], strides = [1, 1]} : vector<2x256xf32> to vector<1x256xf32>
    %212 = vector.broadcast %22 : f32 to vector<1x256xf32>
    %213 = arith.mulf %212, %211 : vector<1x256xf32>
    %214 = vector.extract_strided_slice %210 {offsets = [1, 0], sizes = [1, 256], strides = [1, 1]} : vector<2x256xf32> to vector<1x256xf32>
    %215 = vector.broadcast %71 : f32 to vector<1x256xf32>
    %216 = arith.mulf %215, %214 : vector<1x256xf32>
    %217 = arith.addf %213, %216 : vector<1x256xf32>
    %218 = arith.addf %209, %217 : vector<1x256xf32>
    %219 = vector.extract_strided_slice %13 {offsets = [0, 110], sizes = [2, 256], strides = [1, 1]} : vector<2x512xf32> to vector<2x256xf32>
    %220 = vector.extract_strided_slice %219 {offsets = [0, 0], sizes = [1, 256], strides = [1, 1]} : vector<2x256xf32> to vector<1x256xf32>
    %221 = vector.broadcast %29 : f32 to vector<1x256xf32>
    %222 = arith.mulf %221, %220 : vector<1x256xf32>
    %223 = vector.extract_strided_slice %219 {offsets = [1, 0], sizes = [1, 256], strides = [1, 1]} : vector<2x256xf32> to vector<1x256xf32>
    %224 = vector.broadcast %78 : f32 to vector<1x256xf32>
    %225 = arith.mulf %224, %223 : vector<1x256xf32>
    %226 = arith.addf %222, %225 : vector<1x256xf32>
    %227 = arith.addf %218, %226 : vector<1x256xf32>
    %228 = vector.extract_strided_slice %13 {offsets = [0, 126], sizes = [2, 256], strides = [1, 1]} : vector<2x512xf32> to vector<2x256xf32>
    %229 = vector.extract_strided_slice %228 {offsets = [0, 0], sizes = [1, 256], strides = [1, 1]} : vector<2x256xf32> to vector<1x256xf32>
    %230 = vector.broadcast %36 : f32 to vector<1x256xf32>
    %231 = arith.mulf %230, %229 : vector<1x256xf32>
    %232 = vector.extract_strided_slice %228 {offsets = [1, 0], sizes = [1, 256], strides = [1, 1]} : vector<2x256xf32> to vector<1x256xf32>
    %233 = vector.broadcast %85 : f32 to vector<1x256xf32>
    %234 = arith.mulf %233, %232 : vector<1x256xf32>
    %235 = arith.addf %231, %234 : vector<1x256xf32>
    %236 = arith.addf %227, %235 : vector<1x256xf32>
    %237 = vector.extract_strided_slice %13 {offsets = [0, 142], sizes = [2, 256], strides = [1, 1]} : vector<2x512xf32> to vector<2x256xf32>
    %238 = vector.extract_strided_slice %237 {offsets = [0, 0], sizes = [1, 256], strides = [1, 1]} : vector<2x256xf32> to vector<1x256xf32>
    %239 = vector.broadcast %43 : f32 to vector<1x256xf32>
    %240 = arith.mulf %239, %238 : vector<1x256xf32>
    %241 = vector.extract_strided_slice %237 {offsets = [1, 0], sizes = [1, 256], strides = [1, 1]} : vector<2x256xf32> to vector<1x256xf32>
    %242 = vector.broadcast %92 : f32 to vector<1x256xf32>
    %243 = arith.mulf %242, %241 : vector<1x256xf32>
    %244 = arith.addf %240, %243 : vector<1x256xf32>
    %245 = arith.addf %236, %244 : vector<1x256xf32>
    %246 = vector.extract_strided_slice %13 {offsets = [0, 158], sizes = [2, 256], strides = [1, 1]} : vector<2x512xf32> to vector<2x256xf32>
    %247 = vector.extract_strided_slice %246 {offsets = [0, 0], sizes = [1, 256], strides = [1, 1]} : vector<2x256xf32> to vector<1x256xf32>
    %248 = vector.broadcast %50 : f32 to vector<1x256xf32>
    %249 = arith.mulf %248, %247 : vector<1x256xf32>
    %250 = vector.extract_strided_slice %246 {offsets = [1, 0], sizes = [1, 256], strides = [1, 1]} : vector<2x256xf32> to vector<1x256xf32>
    %251 = vector.broadcast %99 : f32 to vector<1x256xf32>
    %252 = arith.mulf %251, %250 : vector<1x256xf32>
    %253 = arith.addf %249, %252 : vector<1x256xf32>
    %254 = arith.addf %245, %253 : vector<1x256xf32>
    %255 = vector.extract_strided_slice %13 {offsets = [0, 174], sizes = [2, 256], strides = [1, 1]} : vector<2x512xf32> to vector<2x256xf32>
    %256 = vector.extract_strided_slice %255 {offsets = [0, 0], sizes = [1, 256], strides = [1, 1]} : vector<2x256xf32> to vector<1x256xf32>
    %257 = vector.broadcast %57 : f32 to vector<1x256xf32>
    %258 = arith.mulf %257, %256 : vector<1x256xf32>
    %259 = vector.extract_strided_slice %255 {offsets = [1, 0], sizes = [1, 256], strides = [1, 1]} : vector<2x256xf32> to vector<1x256xf32>
    %260 = vector.broadcast %106 : f32 to vector<1x256xf32>
    %261 = arith.mulf %260, %259 : vector<1x256xf32>
    %262 = arith.addf %258, %261 : vector<1x256xf32>
    %263 = arith.addf %254, %262 : vector<1x256xf32>
    %c2_i32 = arith.constant 2 : i32
    %264 = vector.broadcast %c2_i32 : i32 to vector<1x256xi32>
    %265 = arith.cmpi sge, %128, %264 : vector<1x256xi32>
    %c18_i32 = arith.constant 18 : i32
    %266 = vector.broadcast %c18_i32 : i32 to vector<1x256xi32>
    %267 = arith.cmpi slt, %128, %266 : vector<1x256xi32>
    %268 = arith.andi %265, %267 : vector<1x256xi1>
    %cst_20 = arith.constant 0.000000e+00 : f32
    %269 = vector.broadcast %cst_20 : f32 to vector<1x256xf32>
    %270 = arith.select %268, %263, %269 : vector<1x256xi1>, vector<1x256xf32>
    %cst_21 = arith.constant 0.000000e+00 : f32
    %271 = vector.broadcast %cst_21 : f32 to vector<1x256xf32>
    %272 = vector.extract_strided_slice %13 {offsets = [0, 79], sizes = [2, 256], strides = [1, 1]} : vector<2x512xf32> to vector<2x256xf32>
    %273 = vector.extract_strided_slice %272 {offsets = [0, 0], sizes = [1, 256], strides = [1, 1]} : vector<2x256xf32> to vector<1x256xf32>
    %274 = vector.broadcast %16 : f32 to vector<1x256xf32>
    %275 = arith.mulf %274, %273 : vector<1x256xf32>
    %276 = vector.extract_strided_slice %272 {offsets = [1, 0], sizes = [1, 256], strides = [1, 1]} : vector<2x256xf32> to vector<1x256xf32>
    %277 = vector.broadcast %65 : f32 to vector<1x256xf32>
    %278 = arith.mulf %277, %276 : vector<1x256xf32>
    %279 = arith.addf %275, %278 : vector<1x256xf32>
    %280 = arith.addf %271, %279 : vector<1x256xf32>
    %281 = vector.extract_strided_slice %13 {offsets = [0, 95], sizes = [2, 256], strides = [1, 1]} : vector<2x512xf32> to vector<2x256xf32>
    %282 = vector.extract_strided_slice %281 {offsets = [0, 0], sizes = [1, 256], strides = [1, 1]} : vector<2x256xf32> to vector<1x256xf32>
    %283 = vector.broadcast %23 : f32 to vector<1x256xf32>
    %284 = arith.mulf %283, %282 : vector<1x256xf32>
    %285 = vector.extract_strided_slice %281 {offsets = [1, 0], sizes = [1, 256], strides = [1, 1]} : vector<2x256xf32> to vector<1x256xf32>
    %286 = vector.broadcast %72 : f32 to vector<1x256xf32>
    %287 = arith.mulf %286, %285 : vector<1x256xf32>
    %288 = arith.addf %284, %287 : vector<1x256xf32>
    %289 = arith.addf %280, %288 : vector<1x256xf32>
    %290 = vector.extract_strided_slice %13 {offsets = [0, 111], sizes = [2, 256], strides = [1, 1]} : vector<2x512xf32> to vector<2x256xf32>
    %291 = vector.extract_strided_slice %290 {offsets = [0, 0], sizes = [1, 256], strides = [1, 1]} : vector<2x256xf32> to vector<1x256xf32>
    %292 = vector.broadcast %30 : f32 to vector<1x256xf32>
    %293 = arith.mulf %292, %291 : vector<1x256xf32>
    %294 = vector.extract_strided_slice %290 {offsets = [1, 0], sizes = [1, 256], strides = [1, 1]} : vector<2x256xf32> to vector<1x256xf32>
    %295 = vector.broadcast %79 : f32 to vector<1x256xf32>
    %296 = arith.mulf %295, %294 : vector<1x256xf32>
    %297 = arith.addf %293, %296 : vector<1x256xf32>
    %298 = arith.addf %289, %297 : vector<1x256xf32>
    %299 = vector.extract_strided_slice %13 {offsets = [0, 127], sizes = [2, 256], strides = [1, 1]} : vector<2x512xf32> to vector<2x256xf32>
    %300 = vector.extract_strided_slice %299 {offsets = [0, 0], sizes = [1, 256], strides = [1, 1]} : vector<2x256xf32> to vector<1x256xf32>
    %301 = vector.broadcast %37 : f32 to vector<1x256xf32>
    %302 = arith.mulf %301, %300 : vector<1x256xf32>
    %303 = vector.extract_strided_slice %299 {offsets = [1, 0], sizes = [1, 256], strides = [1, 1]} : vector<2x256xf32> to vector<1x256xf32>
    %304 = vector.broadcast %86 : f32 to vector<1x256xf32>
    %305 = arith.mulf %304, %303 : vector<1x256xf32>
    %306 = arith.addf %302, %305 : vector<1x256xf32>
    %307 = arith.addf %298, %306 : vector<1x256xf32>
    %308 = vector.extract_strided_slice %13 {offsets = [0, 143], sizes = [2, 256], strides = [1, 1]} : vector<2x512xf32> to vector<2x256xf32>
    %309 = vector.extract_strided_slice %308 {offsets = [0, 0], sizes = [1, 256], strides = [1, 1]} : vector<2x256xf32> to vector<1x256xf32>
    %310 = vector.broadcast %44 : f32 to vector<1x256xf32>
    %311 = arith.mulf %310, %309 : vector<1x256xf32>
    %312 = vector.extract_strided_slice %308 {offsets = [1, 0], sizes = [1, 256], strides = [1, 1]} : vector<2x256xf32> to vector<1x256xf32>
    %313 = vector.broadcast %93 : f32 to vector<1x256xf32>
    %314 = arith.mulf %313, %312 : vector<1x256xf32>
    %315 = arith.addf %311, %314 : vector<1x256xf32>
    %316 = arith.addf %307, %315 : vector<1x256xf32>
    %317 = vector.extract_strided_slice %13 {offsets = [0, 159], sizes = [2, 256], strides = [1, 1]} : vector<2x512xf32> to vector<2x256xf32>
    %318 = vector.extract_strided_slice %317 {offsets = [0, 0], sizes = [1, 256], strides = [1, 1]} : vector<2x256xf32> to vector<1x256xf32>
    %319 = vector.broadcast %51 : f32 to vector<1x256xf32>
    %320 = arith.mulf %319, %318 : vector<1x256xf32>
    %321 = vector.extract_strided_slice %317 {offsets = [1, 0], sizes = [1, 256], strides = [1, 1]} : vector<2x256xf32> to vector<1x256xf32>
    %322 = vector.broadcast %100 : f32 to vector<1x256xf32>
    %323 = arith.mulf %322, %321 : vector<1x256xf32>
    %324 = arith.addf %320, %323 : vector<1x256xf32>
    %325 = arith.addf %316, %324 : vector<1x256xf32>
    %326 = vector.extract_strided_slice %13 {offsets = [0, 175], sizes = [2, 256], strides = [1, 1]} : vector<2x512xf32> to vector<2x256xf32>
    %327 = vector.extract_strided_slice %326 {offsets = [0, 0], sizes = [1, 256], strides = [1, 1]} : vector<2x256xf32> to vector<1x256xf32>
    %328 = vector.broadcast %58 : f32 to vector<1x256xf32>
    %329 = arith.mulf %328, %327 : vector<1x256xf32>
    %330 = vector.extract_strided_slice %326 {offsets = [1, 0], sizes = [1, 256], strides = [1, 1]} : vector<2x256xf32> to vector<1x256xf32>
    %331 = vector.broadcast %107 : f32 to vector<1x256xf32>
    %332 = arith.mulf %331, %330 : vector<1x256xf32>
    %333 = arith.addf %329, %332 : vector<1x256xf32>
    %334 = arith.addf %325, %333 : vector<1x256xf32>
    %c1_i32_22 = arith.constant 1 : i32
    %335 = vector.broadcast %c1_i32_22 : i32 to vector<1x256xi32>
    %336 = arith.cmpi sge, %128, %335 : vector<1x256xi32>
    %c17_i32 = arith.constant 17 : i32
    %337 = vector.broadcast %c17_i32 : i32 to vector<1x256xi32>
    %338 = arith.cmpi slt, %128, %337 : vector<1x256xi32>
    %339 = arith.andi %336, %338 : vector<1x256xi1>
    %cst_23 = arith.constant 0.000000e+00 : f32
    %340 = vector.broadcast %cst_23 : f32 to vector<1x256xf32>
    %341 = arith.select %339, %334, %340 : vector<1x256xi1>, vector<1x256xf32>
    %cst_24 = arith.constant 0.000000e+00 : f32
    %342 = vector.broadcast %cst_24 : f32 to vector<1x256xf32>
    %343 = vector.extract_strided_slice %13 {offsets = [0, 80], sizes = [2, 256], strides = [1, 1]} : vector<2x512xf32> to vector<2x256xf32>
    %344 = vector.extract_strided_slice %343 {offsets = [0, 0], sizes = [1, 256], strides = [1, 1]} : vector<2x256xf32> to vector<1x256xf32>
    %345 = vector.broadcast %17 : f32 to vector<1x256xf32>
    %346 = arith.mulf %345, %344 : vector<1x256xf32>
    %347 = vector.extract_strided_slice %343 {offsets = [1, 0], sizes = [1, 256], strides = [1, 1]} : vector<2x256xf32> to vector<1x256xf32>
    %348 = vector.broadcast %66 : f32 to vector<1x256xf32>
    %349 = arith.mulf %348, %347 : vector<1x256xf32>
    %350 = arith.addf %346, %349 : vector<1x256xf32>
    %351 = arith.addf %342, %350 : vector<1x256xf32>
    %352 = vector.extract_strided_slice %13 {offsets = [0, 96], sizes = [2, 256], strides = [1, 1]} : vector<2x512xf32> to vector<2x256xf32>
    %353 = vector.extract_strided_slice %352 {offsets = [0, 0], sizes = [1, 256], strides = [1, 1]} : vector<2x256xf32> to vector<1x256xf32>
    %354 = vector.broadcast %24 : f32 to vector<1x256xf32>
    %355 = arith.mulf %354, %353 : vector<1x256xf32>
    %356 = vector.extract_strided_slice %352 {offsets = [1, 0], sizes = [1, 256], strides = [1, 1]} : vector<2x256xf32> to vector<1x256xf32>
    %357 = vector.broadcast %73 : f32 to vector<1x256xf32>
    %358 = arith.mulf %357, %356 : vector<1x256xf32>
    %359 = arith.addf %355, %358 : vector<1x256xf32>
    %360 = arith.addf %351, %359 : vector<1x256xf32>
    %361 = vector.extract_strided_slice %13 {offsets = [0, 112], sizes = [2, 256], strides = [1, 1]} : vector<2x512xf32> to vector<2x256xf32>
    %362 = vector.extract_strided_slice %361 {offsets = [0, 0], sizes = [1, 256], strides = [1, 1]} : vector<2x256xf32> to vector<1x256xf32>
    %363 = vector.broadcast %31 : f32 to vector<1x256xf32>
    %364 = arith.mulf %363, %362 : vector<1x256xf32>
    %365 = vector.extract_strided_slice %361 {offsets = [1, 0], sizes = [1, 256], strides = [1, 1]} : vector<2x256xf32> to vector<1x256xf32>
    %366 = vector.broadcast %80 : f32 to vector<1x256xf32>
    %367 = arith.mulf %366, %365 : vector<1x256xf32>
    %368 = arith.addf %364, %367 : vector<1x256xf32>
    %369 = arith.addf %360, %368 : vector<1x256xf32>
    %370 = vector.extract_strided_slice %13 {offsets = [0, 128], sizes = [2, 256], strides = [1, 1]} : vector<2x512xf32> to vector<2x256xf32>
    %371 = vector.extract_strided_slice %370 {offsets = [0, 0], sizes = [1, 256], strides = [1, 1]} : vector<2x256xf32> to vector<1x256xf32>
    %372 = vector.broadcast %38 : f32 to vector<1x256xf32>
    %373 = arith.mulf %372, %371 : vector<1x256xf32>
    %374 = vector.extract_strided_slice %370 {offsets = [1, 0], sizes = [1, 256], strides = [1, 1]} : vector<2x256xf32> to vector<1x256xf32>
    %375 = vector.broadcast %87 : f32 to vector<1x256xf32>
    %376 = arith.mulf %375, %374 : vector<1x256xf32>
    %377 = arith.addf %373, %376 : vector<1x256xf32>
    %378 = arith.addf %369, %377 : vector<1x256xf32>
    %379 = vector.extract_strided_slice %13 {offsets = [0, 144], sizes = [2, 256], strides = [1, 1]} : vector<2x512xf32> to vector<2x256xf32>
    %380 = vector.extract_strided_slice %379 {offsets = [0, 0], sizes = [1, 256], strides = [1, 1]} : vector<2x256xf32> to vector<1x256xf32>
    %381 = vector.broadcast %45 : f32 to vector<1x256xf32>
    %382 = arith.mulf %381, %380 : vector<1x256xf32>
    %383 = vector.extract_strided_slice %379 {offsets = [1, 0], sizes = [1, 256], strides = [1, 1]} : vector<2x256xf32> to vector<1x256xf32>
    %384 = vector.broadcast %94 : f32 to vector<1x256xf32>
    %385 = arith.mulf %384, %383 : vector<1x256xf32>
    %386 = arith.addf %382, %385 : vector<1x256xf32>
    %387 = arith.addf %378, %386 : vector<1x256xf32>
    %388 = vector.extract_strided_slice %13 {offsets = [0, 160], sizes = [2, 256], strides = [1, 1]} : vector<2x512xf32> to vector<2x256xf32>
    %389 = vector.extract_strided_slice %388 {offsets = [0, 0], sizes = [1, 256], strides = [1, 1]} : vector<2x256xf32> to vector<1x256xf32>
    %390 = vector.broadcast %52 : f32 to vector<1x256xf32>
    %391 = arith.mulf %390, %389 : vector<1x256xf32>
    %392 = vector.extract_strided_slice %388 {offsets = [1, 0], sizes = [1, 256], strides = [1, 1]} : vector<2x256xf32> to vector<1x256xf32>
    %393 = vector.broadcast %101 : f32 to vector<1x256xf32>
    %394 = arith.mulf %393, %392 : vector<1x256xf32>
    %395 = arith.addf %391, %394 : vector<1x256xf32>
    %396 = arith.addf %387, %395 : vector<1x256xf32>
    %397 = vector.extract_strided_slice %13 {offsets = [0, 176], sizes = [2, 256], strides = [1, 1]} : vector<2x512xf32> to vector<2x256xf32>
    %398 = vector.extract_strided_slice %397 {offsets = [0, 0], sizes = [1, 256], strides = [1, 1]} : vector<2x256xf32> to vector<1x256xf32>
    %399 = vector.broadcast %59 : f32 to vector<1x256xf32>
    %400 = arith.mulf %399, %398 : vector<1x256xf32>
    %401 = vector.extract_strided_slice %397 {offsets = [1, 0], sizes = [1, 256], strides = [1, 1]} : vector<2x256xf32> to vector<1x256xf32>
    %402 = vector.broadcast %108 : f32 to vector<1x256xf32>
    %403 = arith.mulf %402, %401 : vector<1x256xf32>
    %404 = arith.addf %400, %403 : vector<1x256xf32>
    %405 = arith.addf %396, %404 : vector<1x256xf32>
    %c0_i32_25 = arith.constant 0 : i32
    %406 = vector.broadcast %c0_i32_25 : i32 to vector<1x256xi32>
    %407 = arith.cmpi sge, %128, %406 : vector<1x256xi32>
    %c16_i32_26 = arith.constant 16 : i32
    %408 = vector.broadcast %c16_i32_26 : i32 to vector<1x256xi32>
    %409 = arith.cmpi slt, %128, %408 : vector<1x256xi32>
    %410 = arith.andi %407, %409 : vector<1x256xi1>
    %cst_27 = arith.constant 0.000000e+00 : f32
    %411 = vector.broadcast %cst_27 : f32 to vector<1x256xf32>
    %412 = arith.select %410, %405, %411 : vector<1x256xi1>, vector<1x256xf32>
    %cst_28 = arith.constant 0.000000e+00 : f32
    %413 = vector.broadcast %cst_28 : f32 to vector<1x256xf32>
    %414 = vector.extract_strided_slice %13 {offsets = [0, 81], sizes = [2, 256], strides = [1, 1]} : vector<2x512xf32> to vector<2x256xf32>
    %415 = vector.extract_strided_slice %414 {offsets = [0, 0], sizes = [1, 256], strides = [1, 1]} : vector<2x256xf32> to vector<1x256xf32>
    %416 = vector.broadcast %18 : f32 to vector<1x256xf32>
    %417 = arith.mulf %416, %415 : vector<1x256xf32>
    %418 = vector.extract_strided_slice %414 {offsets = [1, 0], sizes = [1, 256], strides = [1, 1]} : vector<2x256xf32> to vector<1x256xf32>
    %419 = vector.broadcast %67 : f32 to vector<1x256xf32>
    %420 = arith.mulf %419, %418 : vector<1x256xf32>
    %421 = arith.addf %417, %420 : vector<1x256xf32>
    %422 = arith.addf %413, %421 : vector<1x256xf32>
    %423 = vector.extract_strided_slice %13 {offsets = [0, 97], sizes = [2, 256], strides = [1, 1]} : vector<2x512xf32> to vector<2x256xf32>
    %424 = vector.extract_strided_slice %423 {offsets = [0, 0], sizes = [1, 256], strides = [1, 1]} : vector<2x256xf32> to vector<1x256xf32>
    %425 = vector.broadcast %25 : f32 to vector<1x256xf32>
    %426 = arith.mulf %425, %424 : vector<1x256xf32>
    %427 = vector.extract_strided_slice %423 {offsets = [1, 0], sizes = [1, 256], strides = [1, 1]} : vector<2x256xf32> to vector<1x256xf32>
    %428 = vector.broadcast %74 : f32 to vector<1x256xf32>
    %429 = arith.mulf %428, %427 : vector<1x256xf32>
    %430 = arith.addf %426, %429 : vector<1x256xf32>
    %431 = arith.addf %422, %430 : vector<1x256xf32>
    %432 = vector.extract_strided_slice %13 {offsets = [0, 113], sizes = [2, 256], strides = [1, 1]} : vector<2x512xf32> to vector<2x256xf32>
    %433 = vector.extract_strided_slice %432 {offsets = [0, 0], sizes = [1, 256], strides = [1, 1]} : vector<2x256xf32> to vector<1x256xf32>
    %434 = vector.broadcast %32 : f32 to vector<1x256xf32>
    %435 = arith.mulf %434, %433 : vector<1x256xf32>
    %436 = vector.extract_strided_slice %432 {offsets = [1, 0], sizes = [1, 256], strides = [1, 1]} : vector<2x256xf32> to vector<1x256xf32>
    %437 = vector.broadcast %81 : f32 to vector<1x256xf32>
    %438 = arith.mulf %437, %436 : vector<1x256xf32>
    %439 = arith.addf %435, %438 : vector<1x256xf32>
    %440 = arith.addf %431, %439 : vector<1x256xf32>
    %441 = vector.extract_strided_slice %13 {offsets = [0, 129], sizes = [2, 256], strides = [1, 1]} : vector<2x512xf32> to vector<2x256xf32>
    %442 = vector.extract_strided_slice %441 {offsets = [0, 0], sizes = [1, 256], strides = [1, 1]} : vector<2x256xf32> to vector<1x256xf32>
    %443 = vector.broadcast %39 : f32 to vector<1x256xf32>
    %444 = arith.mulf %443, %442 : vector<1x256xf32>
    %445 = vector.extract_strided_slice %441 {offsets = [1, 0], sizes = [1, 256], strides = [1, 1]} : vector<2x256xf32> to vector<1x256xf32>
    %446 = vector.broadcast %88 : f32 to vector<1x256xf32>
    %447 = arith.mulf %446, %445 : vector<1x256xf32>
    %448 = arith.addf %444, %447 : vector<1x256xf32>
    %449 = arith.addf %440, %448 : vector<1x256xf32>
    %450 = vector.extract_strided_slice %13 {offsets = [0, 145], sizes = [2, 256], strides = [1, 1]} : vector<2x512xf32> to vector<2x256xf32>
    %451 = vector.extract_strided_slice %450 {offsets = [0, 0], sizes = [1, 256], strides = [1, 1]} : vector<2x256xf32> to vector<1x256xf32>
    %452 = vector.broadcast %46 : f32 to vector<1x256xf32>
    %453 = arith.mulf %452, %451 : vector<1x256xf32>
    %454 = vector.extract_strided_slice %450 {offsets = [1, 0], sizes = [1, 256], strides = [1, 1]} : vector<2x256xf32> to vector<1x256xf32>
    %455 = vector.broadcast %95 : f32 to vector<1x256xf32>
    %456 = arith.mulf %455, %454 : vector<1x256xf32>
    %457 = arith.addf %453, %456 : vector<1x256xf32>
    %458 = arith.addf %449, %457 : vector<1x256xf32>
    %459 = vector.extract_strided_slice %13 {offsets = [0, 161], sizes = [2, 256], strides = [1, 1]} : vector<2x512xf32> to vector<2x256xf32>
    %460 = vector.extract_strided_slice %459 {offsets = [0, 0], sizes = [1, 256], strides = [1, 1]} : vector<2x256xf32> to vector<1x256xf32>
    %461 = vector.broadcast %53 : f32 to vector<1x256xf32>
    %462 = arith.mulf %461, %460 : vector<1x256xf32>
    %463 = vector.extract_strided_slice %459 {offsets = [1, 0], sizes = [1, 256], strides = [1, 1]} : vector<2x256xf32> to vector<1x256xf32>
    %464 = vector.broadcast %102 : f32 to vector<1x256xf32>
    %465 = arith.mulf %464, %463 : vector<1x256xf32>
    %466 = arith.addf %462, %465 : vector<1x256xf32>
    %467 = arith.addf %458, %466 : vector<1x256xf32>
    %468 = vector.extract_strided_slice %13 {offsets = [0, 177], sizes = [2, 256], strides = [1, 1]} : vector<2x512xf32> to vector<2x256xf32>
    %469 = vector.extract_strided_slice %468 {offsets = [0, 0], sizes = [1, 256], strides = [1, 1]} : vector<2x256xf32> to vector<1x256xf32>
    %470 = vector.broadcast %60 : f32 to vector<1x256xf32>
    %471 = arith.mulf %470, %469 : vector<1x256xf32>
    %472 = vector.extract_strided_slice %468 {offsets = [1, 0], sizes = [1, 256], strides = [1, 1]} : vector<2x256xf32> to vector<1x256xf32>
    %473 = vector.broadcast %109 : f32 to vector<1x256xf32>
    %474 = arith.mulf %473, %472 : vector<1x256xf32>
    %475 = arith.addf %471, %474 : vector<1x256xf32>
    %476 = arith.addf %467, %475 : vector<1x256xf32>
    %c-1_i32 = arith.constant -1 : i32
    %477 = vector.broadcast %c-1_i32 : i32 to vector<1x256xi32>
    %478 = arith.cmpi sge, %128, %477 : vector<1x256xi32>
    %c15_i32 = arith.constant 15 : i32
    %479 = vector.broadcast %c15_i32 : i32 to vector<1x256xi32>
    %480 = arith.cmpi slt, %128, %479 : vector<1x256xi32>
    %481 = arith.andi %478, %480 : vector<1x256xi1>
    %cst_29 = arith.constant 0.000000e+00 : f32
    %482 = vector.broadcast %cst_29 : f32 to vector<1x256xf32>
    %483 = arith.select %481, %476, %482 : vector<1x256xi1>, vector<1x256xf32>
    %cst_30 = arith.constant 0.000000e+00 : f32
    %484 = vector.broadcast %cst_30 : f32 to vector<1x256xf32>
    %485 = vector.extract_strided_slice %13 {offsets = [0, 82], sizes = [2, 256], strides = [1, 1]} : vector<2x512xf32> to vector<2x256xf32>
    %486 = vector.extract_strided_slice %485 {offsets = [0, 0], sizes = [1, 256], strides = [1, 1]} : vector<2x256xf32> to vector<1x256xf32>
    %487 = vector.broadcast %19 : f32 to vector<1x256xf32>
    %488 = arith.mulf %487, %486 : vector<1x256xf32>
    %489 = vector.extract_strided_slice %485 {offsets = [1, 0], sizes = [1, 256], strides = [1, 1]} : vector<2x256xf32> to vector<1x256xf32>
    %490 = vector.broadcast %68 : f32 to vector<1x256xf32>
    %491 = arith.mulf %490, %489 : vector<1x256xf32>
    %492 = arith.addf %488, %491 : vector<1x256xf32>
    %493 = arith.addf %484, %492 : vector<1x256xf32>
    %494 = vector.extract_strided_slice %13 {offsets = [0, 98], sizes = [2, 256], strides = [1, 1]} : vector<2x512xf32> to vector<2x256xf32>
    %495 = vector.extract_strided_slice %494 {offsets = [0, 0], sizes = [1, 256], strides = [1, 1]} : vector<2x256xf32> to vector<1x256xf32>
    %496 = vector.broadcast %26 : f32 to vector<1x256xf32>
    %497 = arith.mulf %496, %495 : vector<1x256xf32>
    %498 = vector.extract_strided_slice %494 {offsets = [1, 0], sizes = [1, 256], strides = [1, 1]} : vector<2x256xf32> to vector<1x256xf32>
    %499 = vector.broadcast %75 : f32 to vector<1x256xf32>
    %500 = arith.mulf %499, %498 : vector<1x256xf32>
    %501 = arith.addf %497, %500 : vector<1x256xf32>
    %502 = arith.addf %493, %501 : vector<1x256xf32>
    %503 = vector.extract_strided_slice %13 {offsets = [0, 114], sizes = [2, 256], strides = [1, 1]} : vector<2x512xf32> to vector<2x256xf32>
    %504 = vector.extract_strided_slice %503 {offsets = [0, 0], sizes = [1, 256], strides = [1, 1]} : vector<2x256xf32> to vector<1x256xf32>
    %505 = vector.broadcast %33 : f32 to vector<1x256xf32>
    %506 = arith.mulf %505, %504 : vector<1x256xf32>
    %507 = vector.extract_strided_slice %503 {offsets = [1, 0], sizes = [1, 256], strides = [1, 1]} : vector<2x256xf32> to vector<1x256xf32>
    %508 = vector.broadcast %82 : f32 to vector<1x256xf32>
    %509 = arith.mulf %508, %507 : vector<1x256xf32>
    %510 = arith.addf %506, %509 : vector<1x256xf32>
    %511 = arith.addf %502, %510 : vector<1x256xf32>
    %512 = vector.extract_strided_slice %13 {offsets = [0, 130], sizes = [2, 256], strides = [1, 1]} : vector<2x512xf32> to vector<2x256xf32>
    %513 = vector.extract_strided_slice %512 {offsets = [0, 0], sizes = [1, 256], strides = [1, 1]} : vector<2x256xf32> to vector<1x256xf32>
    %514 = vector.broadcast %40 : f32 to vector<1x256xf32>
    %515 = arith.mulf %514, %513 : vector<1x256xf32>
    %516 = vector.extract_strided_slice %512 {offsets = [1, 0], sizes = [1, 256], strides = [1, 1]} : vector<2x256xf32> to vector<1x256xf32>
    %517 = vector.broadcast %89 : f32 to vector<1x256xf32>
    %518 = arith.mulf %517, %516 : vector<1x256xf32>
    %519 = arith.addf %515, %518 : vector<1x256xf32>
    %520 = arith.addf %511, %519 : vector<1x256xf32>
    %521 = vector.extract_strided_slice %13 {offsets = [0, 146], sizes = [2, 256], strides = [1, 1]} : vector<2x512xf32> to vector<2x256xf32>
    %522 = vector.extract_strided_slice %521 {offsets = [0, 0], sizes = [1, 256], strides = [1, 1]} : vector<2x256xf32> to vector<1x256xf32>
    %523 = vector.broadcast %47 : f32 to vector<1x256xf32>
    %524 = arith.mulf %523, %522 : vector<1x256xf32>
    %525 = vector.extract_strided_slice %521 {offsets = [1, 0], sizes = [1, 256], strides = [1, 1]} : vector<2x256xf32> to vector<1x256xf32>
    %526 = vector.broadcast %96 : f32 to vector<1x256xf32>
    %527 = arith.mulf %526, %525 : vector<1x256xf32>
    %528 = arith.addf %524, %527 : vector<1x256xf32>
    %529 = arith.addf %520, %528 : vector<1x256xf32>
    %530 = vector.extract_strided_slice %13 {offsets = [0, 162], sizes = [2, 256], strides = [1, 1]} : vector<2x512xf32> to vector<2x256xf32>
    %531 = vector.extract_strided_slice %530 {offsets = [0, 0], sizes = [1, 256], strides = [1, 1]} : vector<2x256xf32> to vector<1x256xf32>
    %532 = vector.broadcast %54 : f32 to vector<1x256xf32>
    %533 = arith.mulf %532, %531 : vector<1x256xf32>
    %534 = vector.extract_strided_slice %530 {offsets = [1, 0], sizes = [1, 256], strides = [1, 1]} : vector<2x256xf32> to vector<1x256xf32>
    %535 = vector.broadcast %103 : f32 to vector<1x256xf32>
    %536 = arith.mulf %535, %534 : vector<1x256xf32>
    %537 = arith.addf %533, %536 : vector<1x256xf32>
    %538 = arith.addf %529, %537 : vector<1x256xf32>
    %539 = vector.extract_strided_slice %13 {offsets = [0, 178], sizes = [2, 256], strides = [1, 1]} : vector<2x512xf32> to vector<2x256xf32>
    %540 = vector.extract_strided_slice %539 {offsets = [0, 0], sizes = [1, 256], strides = [1, 1]} : vector<2x256xf32> to vector<1x256xf32>
    %541 = vector.broadcast %61 : f32 to vector<1x256xf32>
    %542 = arith.mulf %541, %540 : vector<1x256xf32>
    %543 = vector.extract_strided_slice %539 {offsets = [1, 0], sizes = [1, 256], strides = [1, 1]} : vector<2x256xf32> to vector<1x256xf32>
    %544 = vector.broadcast %110 : f32 to vector<1x256xf32>
    %545 = arith.mulf %544, %543 : vector<1x256xf32>
    %546 = arith.addf %542, %545 : vector<1x256xf32>
    %547 = arith.addf %538, %546 : vector<1x256xf32>
    %c-2_i32 = arith.constant -2 : i32
    %548 = vector.broadcast %c-2_i32 : i32 to vector<1x256xi32>
    %549 = arith.cmpi sge, %128, %548 : vector<1x256xi32>
    %c14_i32 = arith.constant 14 : i32
    %550 = vector.broadcast %c14_i32 : i32 to vector<1x256xi32>
    %551 = arith.cmpi slt, %128, %550 : vector<1x256xi32>
    %552 = arith.andi %549, %551 : vector<1x256xi1>
    %cst_31 = arith.constant 0.000000e+00 : f32
    %553 = vector.broadcast %cst_31 : f32 to vector<1x256xf32>
    %554 = arith.select %552, %547, %553 : vector<1x256xi1>, vector<1x256xf32>
    %cst_32 = arith.constant 0.000000e+00 : f32
    %555 = vector.broadcast %cst_32 : f32 to vector<1x256xf32>
    %556 = vector.extract_strided_slice %13 {offsets = [0, 83], sizes = [2, 256], strides = [1, 1]} : vector<2x512xf32> to vector<2x256xf32>
    %557 = vector.extract_strided_slice %556 {offsets = [0, 0], sizes = [1, 256], strides = [1, 1]} : vector<2x256xf32> to vector<1x256xf32>
    %558 = vector.broadcast %20 : f32 to vector<1x256xf32>
    %559 = arith.mulf %558, %557 : vector<1x256xf32>
    %560 = vector.extract_strided_slice %556 {offsets = [1, 0], sizes = [1, 256], strides = [1, 1]} : vector<2x256xf32> to vector<1x256xf32>
    %561 = vector.broadcast %69 : f32 to vector<1x256xf32>
    %562 = arith.mulf %561, %560 : vector<1x256xf32>
    %563 = arith.addf %559, %562 : vector<1x256xf32>
    %564 = arith.addf %555, %563 : vector<1x256xf32>
    %565 = vector.extract_strided_slice %13 {offsets = [0, 99], sizes = [2, 256], strides = [1, 1]} : vector<2x512xf32> to vector<2x256xf32>
    %566 = vector.extract_strided_slice %565 {offsets = [0, 0], sizes = [1, 256], strides = [1, 1]} : vector<2x256xf32> to vector<1x256xf32>
    %567 = vector.broadcast %27 : f32 to vector<1x256xf32>
    %568 = arith.mulf %567, %566 : vector<1x256xf32>
    %569 = vector.extract_strided_slice %565 {offsets = [1, 0], sizes = [1, 256], strides = [1, 1]} : vector<2x256xf32> to vector<1x256xf32>
    %570 = vector.broadcast %76 : f32 to vector<1x256xf32>
    %571 = arith.mulf %570, %569 : vector<1x256xf32>
    %572 = arith.addf %568, %571 : vector<1x256xf32>
    %573 = arith.addf %564, %572 : vector<1x256xf32>
    %574 = vector.extract_strided_slice %13 {offsets = [0, 115], sizes = [2, 256], strides = [1, 1]} : vector<2x512xf32> to vector<2x256xf32>
    %575 = vector.extract_strided_slice %574 {offsets = [0, 0], sizes = [1, 256], strides = [1, 1]} : vector<2x256xf32> to vector<1x256xf32>
    %576 = vector.broadcast %34 : f32 to vector<1x256xf32>
    %577 = arith.mulf %576, %575 : vector<1x256xf32>
    %578 = vector.extract_strided_slice %574 {offsets = [1, 0], sizes = [1, 256], strides = [1, 1]} : vector<2x256xf32> to vector<1x256xf32>
    %579 = vector.broadcast %83 : f32 to vector<1x256xf32>
    %580 = arith.mulf %579, %578 : vector<1x256xf32>
    %581 = arith.addf %577, %580 : vector<1x256xf32>
    %582 = arith.addf %573, %581 : vector<1x256xf32>
    %583 = vector.extract_strided_slice %13 {offsets = [0, 131], sizes = [2, 256], strides = [1, 1]} : vector<2x512xf32> to vector<2x256xf32>
    %584 = vector.extract_strided_slice %583 {offsets = [0, 0], sizes = [1, 256], strides = [1, 1]} : vector<2x256xf32> to vector<1x256xf32>
    %585 = vector.broadcast %41 : f32 to vector<1x256xf32>
    %586 = arith.mulf %585, %584 : vector<1x256xf32>
    %587 = vector.extract_strided_slice %583 {offsets = [1, 0], sizes = [1, 256], strides = [1, 1]} : vector<2x256xf32> to vector<1x256xf32>
    %588 = vector.broadcast %90 : f32 to vector<1x256xf32>
    %589 = arith.mulf %588, %587 : vector<1x256xf32>
    %590 = arith.addf %586, %589 : vector<1x256xf32>
    %591 = arith.addf %582, %590 : vector<1x256xf32>
    %592 = vector.extract_strided_slice %13 {offsets = [0, 147], sizes = [2, 256], strides = [1, 1]} : vector<2x512xf32> to vector<2x256xf32>
    %593 = vector.extract_strided_slice %592 {offsets = [0, 0], sizes = [1, 256], strides = [1, 1]} : vector<2x256xf32> to vector<1x256xf32>
    %594 = vector.broadcast %48 : f32 to vector<1x256xf32>
    %595 = arith.mulf %594, %593 : vector<1x256xf32>
    %596 = vector.extract_strided_slice %592 {offsets = [1, 0], sizes = [1, 256], strides = [1, 1]} : vector<2x256xf32> to vector<1x256xf32>
    %597 = vector.broadcast %97 : f32 to vector<1x256xf32>
    %598 = arith.mulf %597, %596 : vector<1x256xf32>
    %599 = arith.addf %595, %598 : vector<1x256xf32>
    %600 = arith.addf %591, %599 : vector<1x256xf32>
    %601 = vector.extract_strided_slice %13 {offsets = [0, 163], sizes = [2, 256], strides = [1, 1]} : vector<2x512xf32> to vector<2x256xf32>
    %602 = vector.extract_strided_slice %601 {offsets = [0, 0], sizes = [1, 256], strides = [1, 1]} : vector<2x256xf32> to vector<1x256xf32>
    %603 = vector.broadcast %55 : f32 to vector<1x256xf32>
    %604 = arith.mulf %603, %602 : vector<1x256xf32>
    %605 = vector.extract_strided_slice %601 {offsets = [1, 0], sizes = [1, 256], strides = [1, 1]} : vector<2x256xf32> to vector<1x256xf32>
    %606 = vector.broadcast %104 : f32 to vector<1x256xf32>
    %607 = arith.mulf %606, %605 : vector<1x256xf32>
    %608 = arith.addf %604, %607 : vector<1x256xf32>
    %609 = arith.addf %600, %608 : vector<1x256xf32>
    %610 = vector.extract_strided_slice %13 {offsets = [0, 179], sizes = [2, 256], strides = [1, 1]} : vector<2x512xf32> to vector<2x256xf32>
    %611 = vector.extract_strided_slice %610 {offsets = [0, 0], sizes = [1, 256], strides = [1, 1]} : vector<2x256xf32> to vector<1x256xf32>
    %612 = vector.broadcast %62 : f32 to vector<1x256xf32>
    %613 = arith.mulf %612, %611 : vector<1x256xf32>
    %614 = vector.extract_strided_slice %610 {offsets = [1, 0], sizes = [1, 256], strides = [1, 1]} : vector<2x256xf32> to vector<1x256xf32>
    %615 = vector.broadcast %111 : f32 to vector<1x256xf32>
    %616 = arith.mulf %615, %614 : vector<1x256xf32>
    %617 = arith.addf %613, %616 : vector<1x256xf32>
    %618 = arith.addf %609, %617 : vector<1x256xf32>
    %c-3_i32 = arith.constant -3 : i32
    %619 = vector.broadcast %c-3_i32 : i32 to vector<1x256xi32>
    %620 = arith.cmpi sge, %128, %619 : vector<1x256xi32>
    %c13_i32 = arith.constant 13 : i32
    %621 = vector.broadcast %c13_i32 : i32 to vector<1x256xi32>
    %622 = arith.cmpi slt, %128, %621 : vector<1x256xi32>
    %623 = arith.andi %620, %622 : vector<1x256xi1>
    %cst_33 = arith.constant 0.000000e+00 : f32
    %624 = vector.broadcast %cst_33 : f32 to vector<1x256xf32>
    %625 = arith.select %623, %618, %624 : vector<1x256xi1>, vector<1x256xf32>
    %626 = arith.addf %199, %270 : vector<1x256xf32>
    %627 = arith.addf %341, %412 : vector<1x256xf32>
    %628 = arith.addf %483, %554 : vector<1x256xf32>
    %629 = arith.addf %626, %627 : vector<1x256xf32>
    %630 = arith.addf %628, %625 : vector<1x256xf32>
    %631 = arith.addf %629, %630 : vector<1x256xf32>
    %632 = arith.negf %631 : vector<1x256xf32>
    %633 = math.exp %632 : vector<1x256xf32>
    %cst_34 = arith.constant 1.000000e+00 : f32
    %634 = vector.broadcast %cst_34 : f32 to vector<1x256xf32>
    %635 = arith.addf %634, %633 : vector<1x256xf32>
    %636 = arith.divf %634, %635 : vector<1x256xf32>
    %637 = vector.broadcast %636 : vector<1x256xf32> to vector<4x256xf32>
    %638 = arith.mulf %1, %637 : vector<4x256xf32>
    %c0_35 = arith.constant 0 : index
    %c0_36 = arith.constant 0 : index
    %c0_37 = arith.constant 0 : index
    %639 = vector.load %arg3[%c0_35, %c0_36, %c0_37] : memref<1x4x256xf32, #tpu.memory_space<vmem>>, vector<1x4x256xf32>
    %640 = vector.shape_cast %639 : vector<1x4x256xf32> to vector<4x256xf32>
    %641 = vector.shape_cast %638 : vector<4x256xf32> to vector<1x4x256xf32>
    tpu.vector_store %arg3[%c0_35, %c0_36, %c0_37], %641 {strides = array<i32>} : memref<1x4x256xf32, #tpu.memory_space<vmem>>, vector<1x4x256xf32>,
    return
  }
  func.func @transform_0(%arg0: i32, %arg1: memref<98xf32, #tpu.memory_space<smem>>) -> (i32, i32, i32) {
    %c0_i32 = arith.constant 0 : i32
    %c0_i32_0 = arith.constant 0 : i32
    %c0_i32_1 = arith.constant 0 : i32
    return %arg0, %c0_i32, %c0_i32_0 : i32, i32, i32
  }
  func.func @transform_1(%arg0: i32, %arg1: memref<98xf32, #tpu.memory_space<smem>>) -> (i32, i32, i32) {
    %c0_i32 = arith.constant 0 : i32
    %c0_i32_0 = arith.constant 0 : i32
    %c0_i32_1 = arith.constant 0 : i32
    return %arg0, %c0_i32, %c0_i32_0 : i32, i32, i32
  }
}

</mosaic_0001>

<llo_original>
// kernel: tpu_custom_call.1
$region0: #{tpu_custom_call.1}
  #allocation0 [shape = 'u32[]', space=smem, size = 0x4, offset = 0x4, fixed_abs, tag = 'smem constant byte address 0x4 - core index']
  #allocation1 [shape = 'u32[72,128]{1,0:T(1,128)}', space=vmem, size = 0x9000, scoped, tag = 'internal scratch']
  #allocation2 [shape = 'f32[2,512]{1,0:T(2,128)}', space=vmem, size = 0x1000, scoped, tag = 'scratch operand']
  #allocation3 [shape = 's32[1]{0}', space=sflag, size = 0x4, scoped, tag = 'scoped memory for tpu_custom_call.1']
  #allocation4 [shape = 'u8[512]{0}', space=smem, size = 0x200, scoped, tag = 'prefetched SMEM operand 0']
  %s0 = inlined_call_operand.vmem [shape: f32[98], index: 0, kind: input, shape index: {}]
  %s1 = inlined_call_operand.hbm [shape: f32[2,4,256], index: 1, kind: input, shape index: {}, may-alias: {1,2}]
  %s2 = inlined_call_operand.hbm [shape: f32[2,4,256], index: 2, kind: output, shape index: {}, may-alias: {1,2}]
  %s3 = sld [smem:[#allocation0]]
  $region41: #{tpu_custom_call.1} parent=0
    _
  %s5 = ssub.s32 1, %s3
  %s6 = scalar_select 0, %s5, %s3
  %s8 = sshll.u32 %s0, 4
  %s9 = int_to_ptr.vmem [resolvable:$true] %s8
  %11 = dma.vmem_to_smem %s9, 16, [#allocation4], [#allocation3]
  %13 = dma.done [#allocation3], 16
  %14 = sfence
  $region1: #{tpu_custom_call.1} parent=0
    #allocation5 [shape = 'u8[8192]{0}', space=vmem, size = 0x2000, scoped, tag = 'input window, operand 1']
    #allocation6 [shape = 's32[2]{0}', space=sflag, size = 0x8, scoped, tag = 'scoped memory for tpu_custom_call.1']
    #allocation7 [shape = 's32[2]{0}', space=sflag, size = 0x8, scoped, tag = 'scoped memory for tpu_custom_call.1']
    #allocation8 [shape = 'u8[8192]{0}', space=vmem, size = 0x2000, scoped, tag = 'output window, operand 0']
    %15 = vsyncpa [#allocation6], 0
    %s16 = scalar_lea.sflag [#allocation6], 1
    %17 = vsyncpa %s16, 0
    %18 = vsyncpa [#allocation7], 0
    %s19 = scalar_lea.sflag [#allocation7], 1
    %20 = vsyncpa %s19, 0
    loop: start=0, step=1, limit=4
    $region2: #{tpu_custom_call.1} parent=1 // loop_pre_header
      _
    $region3: #{tpu_custom_call.1} parent=1 // loop_header
      %s22 = sphi 0, %s26
      %p23 = scmp.ge.s32.totalorder %s22, 4
      %s32 = sphi 0, %s34
      %s35 = sphi 0, %s32
      %s36 = sphi 0, %s35
      %s52 = sphi 0, %s36
      %s58 = sphi 0, %s60
      %s61 = sphi 0, %s58
      %s62 = sphi 0, %s61
      %s78 = sphi 0, %s62
    $region4: #{tpu_custom_call.1} parent=1 // loop_header_branch
      %25 = sbr.rel (%p23) target = $region8
    $region5: #{tpu_custom_call.1} parent=1 // loop_body
      %s27 = ssub.s32 %s22, 1
      %s28 = ssub.s32 %s22, 2
      %s29 = sadd.s32 %s22, 1
      %s30 = ssub.s32 %s22, %s29
      %p31 = scmp.eq.s32.totalorder %s30, 0
      %s33 = sadd.s32 %s32, 1
      %s34 = scalar_select %p31, %s32, %s33
      %p37 = pneg %p31
      %p38 = scmp.eq.s32.totalorder %s22, 1
      %p39 = por %p37, %p38
      %p40 = scmp.ne.s32.totalorder %s32, %s35
      %p41 = scmp.eq.s32.totalorder %s22, 0
      %p42 = por %p40, %p41
      %p43 = scmp.ne.s32.totalorder %s32, %s35
      %p44 = scmp.eq.s32.totalorder %s27, 1
      %p45 = por %p43, %p44
      %p46 = scmp.ne.s32.totalorder %s35, %s36
      %p47 = scmp.eq.s32.totalorder %s27, 0
      %p48 = por %p46, %p47
      %p49 = scmp.ne.s32.totalorder %s35, %s36
      %p50 = scmp.eq.s32.totalorder %s28, 1
      %p51 = por %p49, %p50
      %p53 = scmp.ne.s32.totalorder %s36, %s52
      %p54 = scmp.eq.s32.totalorder %s28, 0
      %p55 = por %p53, %p54
      %s56 = ssub.s32 %s22, %s29
      %p57 = scmp.eq.s32.totalorder %s56, 0
      %s59 = sadd.s32 %s58, 1
      %s60 = scalar_select %p57, %s58, %s59
      %p63 = pneg %p57
      %p64 = scmp.eq.s32.totalorder %s22, 1
      %p65 = por %p63, %p64
      %p66 = scmp.ne.s32.totalorder %s58, %s61
      %p67 = scmp.eq.s32.totalorder %s22, 0
      %p68 = por %p66, %p67
      %p69 = scmp.ne.s32.totalorder %s58, %s61
      %p70 = scmp.eq.s32.totalorder %s27, 1
      %p71 = por %p69, %p70
      %p72 = scmp.ne.s32.totalorder %s61, %s62
      %p73 = scmp.eq.s32.totalorder %s27, 0
      %p74 = por %p72, %p73
      %p75 = scmp.ne.s32.totalorder %s61, %s62
      %p76 = scmp.eq.s32.totalorder %s28, 1
      %p77 = por %p75, %p76
      %p79 = scmp.ne.s32.totalorder %s62, %s78
      %p80 = scmp.eq.s32.totalorder %s28, 0
      %p81 = por %p79, %p80
      %p82 = scmp.le.s32.totalorder 1, %s22
      %p83 = scmp.lt.s32.totalorder %s22, 3
      %p84 = pnand %p82, %p83
      %p85 = pneg %p84
      // Predicated region
      $region9: #{tpu_custom_call.1} parent=5 // pred_check
        _
      $region10: #{tpu_custom_call.1} parent=5 // pred_check_branch
        %87 = sbr.rel (%p84) target = $region12
      $region11: #{tpu_custom_call.1} parent=5 // pred_region
        %s88 = ssub.s32 %s22, 1
      $region12: #{tpu_custom_call.1} parent=5 // pred_fallthru
        _
      %p89 = scmp.lt.s32.totalorder %s22, 2
      // Predicated region
      $region13: #{tpu_custom_call.1} parent=5 // pred_check
        %p90 = pneg %p89
      $region14: #{tpu_custom_call.1} parent=5 // pred_check_branch
        %92 = sbr.rel (%p90) target = $region16
      $region15: #{tpu_custom_call.1} parent=5 // pred_region
        // Predicated region
        $region17: #{tpu_custom_call.1} parent=15 // pred_check
          %p93 = pneg %p42
        $region18: #{tpu_custom_call.1} parent=15 // pred_check_branch
          %95 = sbr.rel (%p93) target = $region20
        $region19: #{tpu_custom_call.1} parent=15 // pred_region
          %s96 = sand.u32 %s32, 1
          %s97 = scalar_lea.sflag [#allocation6], %s96
          %s98 = sand.u32 %s32, 1
          %s99 = smul.addr %s98, 8
          %s100 = scalar_lea.vmem [#allocation5], %s99
          %102 = vsyncadd %s97, 0
          %s103 = smul.addr %s22, 2
          %s104 = smul.addr %s103, 4
          %s105 = scalar_lea.hbm %s1, %s104
          %s107 = sshll.u32 %s105, 4
          %s108 = int_to_ptr.hbm [resolvable:$true] %s107
          %s109 = sshll.u32 %s100, 4
          %s110 = int_to_ptr.vmem [resolvable:$true] %s109
          %112 = dma.hbm_to_vmem [thread:$0]  %s108, 128, %s110, %s97
        $region20: #{tpu_custom_call.1} parent=15 // pred_fallthru
          _
      $region16: #{tpu_custom_call.1} parent=5 // pred_fallthru
        _
      %p113 = scmp.le.s32.totalorder 1, %s22
      %p114 = scmp.lt.s32.totalorder %s22, 3
      %p115 = pnand %p113, %p114
      %p116 = pneg %p115
      // Predicated region
      $region21: #{tpu_custom_call.1} parent=5 // pred_check
        _
      $region22: #{tpu_custom_call.1} parent=5 // pred_check_branch
        %118 = sbr.rel (%p115) target = $region24
      $region23: #{tpu_custom_call.1} parent=5 // pred_region
        %s119 = ssub.s32 %s22, 1
        %s120 = sand.u32 %s35, 1
        %s121 = scalar_lea.sflag [#allocation6], %s120
        %s122 = sand.u32 %s35, 1
        %s123 = smul.addr %s122, 8
        %s124 = scalar_lea.vmem [#allocation5], %s123
        // Predicated region
        $region25: #{tpu_custom_call.1} parent=23 // pred_check
          %p125 = pneg %p48
        $region26: #{tpu_custom_call.1} parent=23 // pred_check_branch
          %127 = sbr.rel (%p125) target = $region28
        $region27: #{tpu_custom_call.1} parent=23 // pred_region
          %129 = dma.done %s121, 128
        $region28: #{tpu_custom_call.1} parent=23 // pred_fallthru
          _
        %s130 = sand.u32 %s35, 1
        %s131 = scalar_lea.sflag [#allocation6], %s130
        %s132 = sand.u32 %s35, 1
        %s133 = smul.addr %s132, 8
        %s134 = scalar_lea.vmem [#allocation5], %s133
        %p135 = pneg %p48
        %p136 = pneg %p45
        %p137 = pneg %p74
        %p138 = pneg %p71
        %s139 = sand.u32 %s61, 1
        %s140 = scalar_lea.sflag [#allocation7], %s139
        %s141 = sand.u32 %s61, 1
        %s142 = smul.addr %s141, 8
        %s143 = scalar_lea.vmem [#allocation8], %s142
        %v144 = vld [vmem:[%s124] sm:$0xff]
        %146 = vst [vmem:[#allocation1] ss:$2 sm:$0xff] %v144
        %v147 = vld.sshfl [vmem:[#allocation1] sm:$0xff pattern:$0x75316420]
        %v148 = vld.sshfl [vmem:[#allocation1 + $0x8] sm:$0xff pattern:$0x75316420]
        %vm151 = vcmask 1043456
        %v152 = vsel %vm151, %v147, 0.0
        %v153 = vrot.slane %v152, 4
        %v154 = vadd.f32 %v152, %v153
        %v155 = vrot.slane %v154, 2
        %v156 = vadd.f32 %v154, %v155
        %v157 = vrot.slane %v156, 1
        %v158 = vadd.f32 %v156, %v157
        %v159 = vsel %vm151, %v148, 0.0
        %v160 = vrot.slane %v159, 4
        %v161 = vadd.f32 %v159, %v160
        %v162 = vrot.slane %v161, 2
        %v163 = vadd.f32 %v161, %v162
        %v164 = vrot.slane %v163, 1
        %v165 = vadd.f32 %v163, %v164
        %v166 = vmul.f32 %v158, 0.25
        %v167 = vmul.f32 %v165, 0.25
        %168 = vst [vmem:[#allocation1] ss:$2 sm:$0xff] %v144
        %v169 = vld.sshfl [vmem:[#allocation1] sm:$0xff pattern:$0x75316420]
        %v170 = vld.sshfl [vmem:[#allocation1 + $0x8] sm:$0xff pattern:$0x75316420]
        %v173 = vsel %vm151, %v169, -inf
        %v174 = vrot.slane %v173, 4
        %v175 = vmax.f32 %v173, %v174
        %v176 = vrot.slane %v175, 2
        %v177 = vmax.f32 %v175, %v176
        %v178 = vrot.slane %v177, 1
        %v179 = vmax.f32 %v177, %v178
        %v180 = vsel %vm151, %v170, -inf
        %v181 = vrot.slane %v180, 4
        %v182 = vmax.f32 %v180, %v181
        %v183 = vrot.slane %v182, 2
        %v184 = vmax.f32 %v182, %v183
        %v185 = vrot.slane %v184, 1
        %v186 = vmax.f32 %v184, %v185
        %187 = vst [vmem:[#allocation2] sm:$0x3] 0.0
        %188 = vst [vmem:[#allocation2 + $0x6] sm:$0x3] 0.0
        %v191 = vrot.slane %v167, 7
        %vm192 = vcmask 1040384
        %v193 = vsel %vm192, %v166, %v191
        %v195 = vlaneseq
        %vm196 = vcmp.ge.s32.totalorder %v195, 0
        %vm197 = vcmp.lt.s32.totalorder %v195, 256
        %vm198 = vmand %vm196, %vm197
        %s199 = scalar_lea.vmem [#allocation2], 2
        %200 = vst.msk [vmem:[%s199] ss:$2 sm:$0x3] %vm198, %v193
        %v203 = vrot.slane %v186, 7
        %v204 = vsel %vm192, %v179, %v203
        %s206 = scalar_lea.vmem [#allocation2], 3
        %207 = vst.msk [vmem:[%s206] ss:$2 sm:$0x3] %vm198, %v204
        %v208 = vld [vmem:[#allocation2] sm:$0xff]
        %s209 = sld [smem:[#allocation4]]
        %s210 = sld [smem:[#allocation4 + $0x1]]
        %s211 = sld [smem:[#allocation4 + $0x2]]
        %s212 = sld [smem:[#allocation4 + $0x3]]
        %s213 = sld [smem:[#allocation4 + $0x4]]
        %s214 = sld [smem:[#allocation4 + $0x5]]
        %s215 = sld [smem:[#allocation4 + $0x6]]
        %s216 = sld [smem:[#allocation4 + $0x7]]
        %s217 = sld [smem:[#allocation4 + $0x8]]
        %s218 = sld [smem:[#allocation4 + $0x9]]
        %s219 = sld [smem:[#allocation4 + $0xa]]
        %s220 = sld [smem:[#allocation4 + $0xb]]
        %s221 = sld [smem:[#allocation4 + $0xc]]
        %s222 = sld [smem:[#allocation4 + $0xd]]
        %s223 = sld [smem:[#allocation4 + $0xe]]
        %s224 = sld [smem:[#allocation4 + $0xf]]
        %s225 = sld [smem:[#allocation4 + $0x10]]
        %s226 = sld [smem:[#allocation4 + $0x11]]
        %s227 = sld [smem:[#allocation4 + $0x12]]
        %s228 = sld [smem:[#allocation4 + $0x13]]
        %s229 = sld [smem:[#allocation4 + $0x14]]
        %s230 = sld [smem:[#allocation4 + $0x15]]
        %s231 = sld [smem:[#allocation4 + $0x16]]
        %s232 = sld [smem:[#allocation4 + $0x17]]
        %s233 = sld [smem:[#allocation4 + $0x18]]
        %s234 = sld [smem:[#allocation4 + $0x19]]
        %s235 = sld [smem:[#allocation4 + $0x1a]]
        %s236 = sld [smem:[#allocation4 + $0x1b]]
        %s237 = sld [smem:[#allocation4 + $0x1c]]
        %s238 = sld [smem:[#allocation4 + $0x1d]]
        %s239 = sld [smem:[#allocation4 + $0x1e]]
        %s240 = sld [smem:[#allocation4 + $0x1f]]
        %s241 = sld [smem:[#allocation4 + $0x20]]
        %s242 = sld [smem:[#allocation4 + $0x21]]
        %s243 = sld [smem:[#allocation4 + $0x22]]
        %s244 = sld [smem:[#allocation4 + $0x23]]
        %s245 = sld [smem:[#allocation4 + $0x24]]
        %s246 = sld [smem:[#allocation4 + $0x25]]
        %s247 = sld [smem:[#allocation4 + $0x26]]
        %s248 = sld [smem:[#allocation4 + $0x27]]
        %s249 = sld [smem:[#allocation4 + $0x28]]
        %s250 = sld [smem:[#allocation4 + $0x29]]
        %s251 = sld [smem:[#allocation4 + $0x2a]]
        %s252 = sld [smem:[#allocation4 + $0x2b]]
        %s253 = sld [smem:[#allocation4 + $0x2c]]
        %s254 = sld [smem:[#allocation4 + $0x2d]]
        %s255 = sld [smem:[#allocation4 + $0x2e]]
        %s256 = sld [smem:[#allocation4 + $0x2f]]
        %s257 = sld [smem:[#allocation4 + $0x30]]
        %s258 = sld [smem:[#allocation4 + $0x31]]
        %s259 = sld [smem:[#allocation4 + $0x32]]
        %s260 = sld [smem:[#allocation4 + $0x33]]
        %s261 = sld [smem:[#allocation4 + $0x34]]
        %s262 = sld [smem:[#allocation4 + $0x35]]
        %s263 = sld [smem:[#allocation4 + $0x36]]
        %s264 = sld [smem:[#allocation4 + $0x37]]
        %s265 = sld [smem:[#allocation4 + $0x38]]
        %s266 = sld [smem:[#allocation4 + $0x39]]
        %s267 = sld [smem:[#allocation4 + $0x3a]]
        %s268 = sld [smem:[#allocation4 + $0x3b]]
        %s269 = sld [smem:[#allocation4 + $0x3c]]
        %s270 = sld [smem:[#allocation4 + $0x3d]]
        %s271 = sld [smem:[#allocation4 + $0x3e]]
        %s272 = sld [smem:[#allocation4 + $0x3f]]
        %s273 = sld [smem:[#allocation4 + $0x40]]
        %s274 = sld [smem:[#allocation4 + $0x41]]
        %s275 = sld [smem:[#allocation4 + $0x42]]
        %s276 = sld [smem:[#allocation4 + $0x43]]
        %s277 = sld [smem:[#allocation4 + $0x44]]
        %s278 = sld [smem:[#allocation4 + $0x45]]
        %s279 = sld [smem:[#allocation4 + $0x46]]
        %s280 = sld [smem:[#allocation4 + $0x47]]
        %s281 = sld [smem:[#allocation4 + $0x48]]
        %s282 = sld [smem:[#allocation4 + $0x49]]
        %s283 = sld [smem:[#allocation4 + $0x4a]]
        %s284 = sld [smem:[#allocation4 + $0x4b]]
        %s285 = sld [smem:[#allocation4 + $0x4c]]
        %s286 = sld [smem:[#allocation4 + $0x4d]]
        %s287 = sld [smem:[#allocation4 + $0x4e]]
        %s288 = sld [smem:[#allocation4 + $0x4f]]
        %s289 = sld [smem:[#allocation4 + $0x50]]
        %s290 = sld [smem:[#allocation4 + $0x51]]
        %s291 = sld [smem:[#allocation4 + $0x52]]
        %s292 = sld [smem:[#allocation4 + $0x53]]
        %s293 = sld [smem:[#allocation4 + $0x54]]
        %s294 = sld [smem:[#allocation4 + $0x55]]
        %s295 = sld [smem:[#allocation4 + $0x56]]
        %s296 = sld [smem:[#allocation4 + $0x57]]
        %s297 = sld [smem:[#allocation4 + $0x58]]
        %s298 = sld [smem:[#allocation4 + $0x59]]
        %s299 = sld [smem:[#allocation4 + $0x5a]]
        %s300 = sld [smem:[#allocation4 + $0x5b]]
        %s301 = sld [smem:[#allocation4 + $0x5c]]
        %s302 = sld [smem:[#allocation4 + $0x5d]]
        %s303 = sld [smem:[#allocation4 + $0x5e]]
        %s304 = sld [smem:[#allocation4 + $0x5f]]
        %s305 = sld [smem:[#allocation4 + $0x60]]
        %s306 = sld [smem:[#allocation4 + $0x61]]
        %v307 = vlaneseq
        %v308 = vand.u32 %v307, 127
        %v309 = vadd.s32 %v308, 128
        %vm310 = vcmp.lt.s32.totalorder %v308, 0
        %v311 = vsub.s32 0, %v308
        %v312 = vsel %vm310, %v311, %v308
        %v313 = vshrl.u32 %v312, 4
        %v314 = vand.u32 %v312, 15
        %v315 = vsub.s32 0, %v314
        %v316 = vsel %vm310, %v315, %v314
        %vm317 = vcmp.lt.s32.totalorder %v309, 0
        %v318 = vsub.s32 0, %v309
        %v319 = vsel %vm317, %v318, %v309
        %v320 = vshrl.u32 %v319, 4
        %v321 = vand.u32 %v319, 15
        %v322 = vsub.s32 0, %v321
        %v323 = vsel %vm317, %v322, %v321
        %vm324 = vcmp.ne.s32.totalorder %v316, 0
        %vm325 = vcmp.ne.s32.totalorder %v323, 0
        %vm326 = vcmp.lt.s32.totalorder %v316, 0
        %vm327 = vcmp.lt.s32.totalorder %v323, 0
        %vm328 = vmand %vm326, %vm324
        %vm329 = vmand %vm327, %vm325
        %v330 = vadd.s32 %v316, 16
        %v331 = vadd.s32 %v323, 16
        %v332 = vsel %vm328, %v330, %v316
        %v333 = vsel %vm329, %v331, %v323
        %v334 = vstv %s209
        %v335 = vmul.f32 %v334, %v208
        %v336 = vstv %s258
        %v337 = vmul.f32 %v336, %v208
        %v339 = vrot.slane %v337, 7
        %v340 = vrot.slane %v339, 2
        %v342 = vadd.f32 %v335, %v340
        %v343 = vadd.f32 %v342, 0.0
        %v344 = vstv %s216
        %v345 = vmul.f32 %v344, %v208
        %v346 = vstv %s265
        %v347 = vmul.f32 %v346, %v208
        %v349 = vrot.slane %v347, 7
        %v350 = vrot.slane %v349, 2
        %v352 = vadd.f32 %v345, %v350
        %354 = vrot.lane.b32.xlu0 %v352, 112
        %v355 = vpop.permute.xlu0 %354
        %v356 = vrot.slane %v355, 2
        %vm357 = vcmask 916480
        %v358 = vsel %vm357, %v355, %v356
        %v360 = vadd.f32 %v343, %v358
        %v361 = vstv %s223
        %v362 = vmul.f32 %v361, %v208
        %v363 = vstv %s272
        %v364 = vmul.f32 %v363, %v208
        %v366 = vrot.slane %v364, 7
        %v367 = vrot.slane %v366, 2
        %v369 = vadd.f32 %v362, %v367
        %371 = vrot.lane.b32.xlu0 %v369, 96
        %v372 = vpop.permute.xlu0 %371
        %v373 = vrot.slane %v372, 2
        %vm374 = vcmask 785408
        %v375 = vsel %vm374, %v372, %v373
        %v377 = vadd.f32 %v360, %v375
        %v378 = vstv %s230
        %v379 = vmul.f32 %v378, %v208
        %v380 = vstv %s279
        %v381 = vmul.f32 %v380, %v208
        %v383 = vrot.slane %v381, 7
        %v384 = vrot.slane %v383, 2
        %v386 = vadd.f32 %v379, %v384
        %388 = vrot.lane.b32.xlu0 %v386, 80
        %v389 = vpop.permute.xlu0 %388
        %v390 = vrot.slane %v389, 2
        %vm391 = vcmask 654336
        %v392 = vsel %vm391, %v389, %v390
        %v394 = vadd.f32 %v377, %v392
        %v395 = vstv %s237
        %397 = vrot.lane.b32.xlu0 %v208, 115
        %v398 = vpop.permute.xlu0 %397
        %v399 = vrot.slane %v398, 2
        %v400 = vrot.slane %v398, 4
        %vm401 = vcmask 941056
        %v402 = vsel %vm401, %v399, %v400
        %v404 = vmul.f32 %v395, %v402
        %v405 = vstv %s286
        %v406 = vmul.f32 %v405, %v402
        %v408 = vrot.slane %v406, 7
        %v409 = vrot.slane %v408, 2
        %v411 = vadd.f32 %v404, %v409
        %413 = vrot.lane.b32.xlu0 %v411, 77
        %v414 = vpop.permute.xlu0 %413
        %v415 = vrot.slane %v414, 6
        %vm416 = vcmask 629760
        %v417 = vsel %vm416, %v415, %v414
        %v419 = vadd.f32 %v394, %v417
        %v420 = vstv %s244
        %421 = vrot.lane.b32.xlu0 %v208, 99
        %v422 = vpop.permute.xlu0 %421
        %v423 = vrot.slane %v422, 2
        %v424 = vrot.slane %v422, 4
        %vm425 = vcmask 809984
        %v426 = vsel %vm425, %v423, %v424
        %v428 = vmul.f32 %v420, %v426
        %v429 = vstv %s293
        %v430 = vmul.f32 %v429, %v426
        %v432 = vrot.slane %v430, 7
        %v433 = vrot.slane %v432, 2
        %v435 = vadd.f32 %v428, %v433
        %437 = vrot.lane.b32.xlu0 %v435, 77
        %v438 = vpop.permute.xlu0 %437
        %v439 = vrot.slane %v438, 6
        %v440 = vsel %vm416, %v439, %v438
        %v442 = vadd.f32 %v419, %v440
        %v443 = vstv %s251
        %444 = vrot.lane.b32.xlu0 %v208, 83
        %v445 = vpop.permute.xlu0 %444
        %v446 = vrot.slane %v445, 2
        %v447 = vrot.slane %v445, 4
        %vm448 = vcmask 678912
        %v449 = vsel %vm448, %v446, %v447
        %v451 = vmul.f32 %v443, %v449
        %v452 = vstv %s300
        %v453 = vmul.f32 %v452, %v449
        %v455 = vrot.slane %v453, 7
        %v456 = vrot.slane %v455, 2
        %v458 = vadd.f32 %v451, %v456
        %460 = vrot.lane.b32.xlu0 %v458, 77
        %v461 = vpop.permute.xlu0 %460
        %v462 = vrot.slane %v461, 6
        %v463 = vsel %vm416, %v462, %v461
        %v465 = vadd.f32 %v442, %v463
        %vm466 = vcmp.ge.s32.totalorder %v332, 3
        %vm467 = vcmp.ge.s32.totalorder %v333, 3
        %vm468 = vcmp.lt.s32.totalorder %v332, 19
        %vm469 = vcmp.lt.s32.totalorder %v333, 19
        %vm470 = vmand %vm466, %vm468
        %vm471 = vmand %vm467, %vm469
        %v473 = vperm.slane %v465, 0
        %v474 = vperm.slane %v465, 2
        %v475 = vperm.slane %v465, 4
        %476 = vrot.lane.b32.xlu0 %v473, 51
        %v477 = vpop.permute.xlu0 %476
        %478 = vrot.lane.b32.xlu0 %v474, 51
        %v479 = vpop.permute.xlu0 %478
        %480 = vrot.lane.b32.xlu0 %v475, 51
        %v481 = vpop.permute.xlu0 %480
        %vm482 = vcmask 416768
        %v483 = vsel %vm482, %v477, %v479
        %v484 = vsel %vm482, %v479, %v481
        %v487 = vsel %vm470, %v483, 0.0
        %v488 = vsel %vm471, %v484, 0.0
        %v489 = vstv %s210
        %v490 = vmul.f32 %v489, %v208
        %v491 = vstv %s259
        %v492 = vmul.f32 %v491, %v208
        %v494 = vrot.slane %v492, 7
        %v495 = vrot.slane %v494, 2
        %v497 = vadd.f32 %v490, %v495
        %v498 = vadd.f32 %v497, 0.0
        %v499 = vstv %s217
        %v500 = vmul.f32 %v499, %v208
        %v501 = vstv %s266
        %v502 = vmul.f32 %v501, %v208
        %v504 = vrot.slane %v502, 7
        %v505 = vrot.slane %v504, 2
        %v507 = vadd.f32 %v500, %v505
        %509 = vrot.lane.b32.xlu0 %v507, 112
        %v510 = vpop.permute.xlu0 %509
        %v511 = vrot.slane %v510, 2
        %v512 = vsel %vm357, %v510, %v511
        %v514 = vadd.f32 %v498, %v512
        %v515 = vstv %s224
        %v516 = vmul.f32 %v515, %v208
        %v517 = vstv %s273
        %v518 = vmul.f32 %v517, %v208
        %v520 = vrot.slane %v518, 7
        %v521 = vrot.slane %v520, 2
        %v523 = vadd.f32 %v516, %v521
        %525 = vrot.lane.b32.xlu0 %v523, 96
        %v526 = vpop.permute.xlu0 %525
        %v527 = vrot.slane %v526, 2
        %v528 = vsel %vm374, %v526, %v527
        %v530 = vadd.f32 %v514, %v528
        %v531 = vstv %s231
        %v532 = vmul.f32 %v531, %v208
        %v533 = vstv %s280
        %v534 = vmul.f32 %v533, %v208
        %v536 = vrot.slane %v534, 7
        %v537 = vrot.slane %v536, 2
        %v539 = vadd.f32 %v532, %v537
        %541 = vrot.lane.b32.xlu0 %v539, 80
        %v542 = vpop.permute.xlu0 %541
        %v543 = vrot.slane %v542, 2
        %v544 = vsel %vm391, %v542, %v543
        %v546 = vadd.f32 %v530, %v544
        %v547 = vstv %s238
        %548 = vrot.lane.b32.xlu0 %v208, 114
        %v549 = vpop.permute.xlu0 %548
        %v550 = vrot.slane %v549, 2
        %v551 = vrot.slane %v549, 4
        %vm552 = vcmask 932864
        %v553 = vsel %vm552, %v550, %v551
        %v555 = vmul.f32 %v547, %v553
        %v556 = vstv %s287
        %v557 = vmul.f32 %v556, %v553
        %v559 = vrot.slane %v557, 7
        %v560 = vrot.slane %v559, 2
        %v562 = vadd.f32 %v555, %v560
        %564 = vrot.lane.b32.xlu0 %v562, 78
        %v565 = vpop.permute.xlu0 %564
        %v566 = vrot.slane %v565, 6
        %vm567 = vcmask 637952
        %v568 = vsel %vm567, %v566, %v565
        %v570 = vadd.f32 %v546, %v568
        %v571 = vstv %s245
        %572 = vrot.lane.b32.xlu0 %v208, 98
        %v573 = vpop.permute.xlu0 %572
        %v574 = vrot.slane %v573, 2
        %v575 = vrot.slane %v573, 4
        %vm576 = vcmask 801792
        %v577 = vsel %vm576, %v574, %v575
        %v579 = vmul.f32 %v571, %v577
        %v580 = vstv %s294
        %v581 = vmul.f32 %v580, %v577
        %v583 = vrot.slane %v581, 7
        %v584 = vrot.slane %v583, 2
        %v586 = vadd.f32 %v579, %v584
        %588 = vrot.lane.b32.xlu0 %v586, 78
        %v589 = vpop.permute.xlu0 %588
        %v590 = vrot.slane %v589, 6
        %v591 = vsel %vm567, %v590, %v589
        %v593 = vadd.f32 %v570, %v591
        %v594 = vstv %s252
        %595 = vrot.lane.b32.xlu0 %v208, 82
        %v596 = vpop.permute.xlu0 %595
        %v597 = vrot.slane %v596, 2
        %v598 = vrot.slane %v596, 4
        %vm599 = vcmask 670720
        %v600 = vsel %vm599, %v597, %v598
        %v602 = vmul.f32 %v594, %v600
        %v603 = vstv %s301
        %v604 = vmul.f32 %v603, %v600
        %v606 = vrot.slane %v604, 7
        %v607 = vrot.slane %v606, 2
        %v609 = vadd.f32 %v602, %v607
        %611 = vrot.lane.b32.xlu0 %v609, 78
        %v612 = vpop.permute.xlu0 %611
        %v613 = vrot.slane %v612, 6
        %v614 = vsel %vm567, %v613, %v612
        %v616 = vadd.f32 %v593, %v614
        %vm617 = vcmp.ge.s32.totalorder %v332, 2
        %vm618 = vcmp.ge.s32.totalorder %v333, 2
        %vm619 = vcmp.lt.s32.totalorder %v332, 18
        %vm620 = vcmp.lt.s32.totalorder %v333, 18
        %vm621 = vmand %vm617, %vm619
        %vm622 = vmand %vm618, %vm620
        %v624 = vperm.slane %v616, 0
        %v625 = vperm.slane %v616, 2
        %v626 = vperm.slane %v616, 4
        %627 = vrot.lane.b32.xlu0 %v624, 50
        %v628 = vpop.permute.xlu0 %627
        %629 = vrot.lane.b32.xlu0 %v625, 50
        %v630 = vpop.permute.xlu0 %629
        %631 = vrot.lane.b32.xlu0 %v626, 50
        %v632 = vpop.permute.xlu0 %631
        %vm633 = vcmask 408576
        %v634 = vsel %vm633, %v628, %v630
        %v635 = vsel %vm633, %v630, %v632
        %v638 = vsel %vm621, %v634, 0.0
        %v639 = vsel %vm622, %v635, 0.0
        %v640 = vstv %s211
        %v641 = vmul.f32 %v640, %v208
        %v642 = vstv %s260
        %v643 = vmul.f32 %v642, %v208
        %v645 = vrot.slane %v643, 7
        %v646 = vrot.slane %v645, 2
        %v648 = vadd.f32 %v641, %v646
        %v649 = vadd.f32 %v648, 0.0
        %v650 = vstv %s218
        %v651 = vmul.f32 %v650, %v208
        %v652 = vstv %s267
        %v653 = vmul.f32 %v652, %v208
        %v655 = vrot.slane %v653, 7
        %v656 = vrot.slane %v655, 2
        %v658 = vadd.f32 %v651, %v656
        %660 = vrot.lane.b32.xlu0 %v658, 112
        %v661 = vpop.permute.xlu0 %660
        %v662 = vrot.slane %v661, 2
        %v663 = vsel %vm357, %v661, %v662
        %v665 = vadd.f32 %v649, %v663
        %v666 = vstv %s225
        %v667 = vmul.f32 %v666, %v208
        %v668 = vstv %s274
        %v669 = vmul.f32 %v668, %v208
        %v671 = vrot.slane %v669, 7
        %v672 = vrot.slane %v671, 2
        %v674 = vadd.f32 %v667, %v672
        %676 = vrot.lane.b32.xlu0 %v674, 96
        %v677 = vpop.permute.xlu0 %676
        %v678 = vrot.slane %v677, 2
        %v679 = vsel %vm374, %v677, %v678
        %v681 = vadd.f32 %v665, %v679
        %v682 = vstv %s232
        %v683 = vmul.f32 %v682, %v208
        %v684 = vstv %s281
        %v685 = vmul.f32 %v684, %v208
        %v687 = vrot.slane %v685, 7
        %v688 = vrot.slane %v687, 2
        %v690 = vadd.f32 %v683, %v688
        %692 = vrot.lane.b32.xlu0 %v690, 80
        %v693 = vpop.permute.xlu0 %692
        %v694 = vrot.slane %v693, 2
        %v695 = vsel %vm391, %v693, %v694
        %v697 = vadd.f32 %v681, %v695
        %v698 = vstv %s239
        %699 = vrot.lane.b32.xlu0 %v208, 113
        %v700 = vpop.permute.xlu0 %699
        %v701 = vrot.slane %v700, 2
        %v702 = vrot.slane %v700, 4
        %vm703 = vcmask 924672
        %v704 = vsel %vm703, %v701, %v702
        %v706 = vmul.f32 %v698, %v704
        %v707 = vstv %s288
        %v708 = vmul.f32 %v707, %v704
        %v710 = vrot.slane %v708, 7
        %v711 = vrot.slane %v710, 2
        %v713 = vadd.f32 %v706, %v711
        %715 = vrot.lane.b32.xlu0 %v713, 79
        %v716 = vpop.permute.xlu0 %715
        %v717 = vrot.slane %v716, 6
        %vm718 = vcmask 646144
        %v719 = vsel %vm718, %v717, %v716
        %v721 = vadd.f32 %v697, %v719
        %v722 = vstv %s246
        %723 = vrot.lane.b32.xlu0 %v208, 97
        %v724 = vpop.permute.xlu0 %723
        %v725 = vrot.slane %v724, 2
        %v726 = vrot.slane %v724, 4
        %vm727 = vcmask 793600
        %v728 = vsel %vm727, %v725, %v726
        %v730 = vmul.f32 %v722, %v728
        %v731 = vstv %s295
        %v732 = vmul.f32 %v731, %v728
        %v734 = vrot.slane %v732, 7
        %v735 = vrot.slane %v734, 2
        %v737 = vadd.f32 %v730, %v735
        %739 = vrot.lane.b32.xlu0 %v737, 79
        %v740 = vpop.permute.xlu0 %739
        %v741 = vrot.slane %v740, 6
        %v742 = vsel %vm718, %v741, %v740
        %v744 = vadd.f32 %v721, %v742
        %v745 = vstv %s253
        %746 = vrot.lane.b32.xlu0 %v208, 81
        %v747 = vpop.permute.xlu0 %746
        %v748 = vrot.slane %v747, 2
        %v749 = vrot.slane %v747, 4
        %vm750 = vcmask 662528
        %v751 = vsel %vm750, %v748, %v749
        %v753 = vmul.f32 %v745, %v751
        %v754 = vstv %s302
        %v755 = vmul.f32 %v754, %v751
        %v757 = vrot.slane %v755, 7
        %v758 = vrot.slane %v757, 2
        %v760 = vadd.f32 %v753, %v758
        %762 = vrot.lane.b32.xlu0 %v760, 79
        %v763 = vpop.permute.xlu0 %762
        %v764 = vrot.slane %v763, 6
        %v765 = vsel %vm718, %v764, %v763
        %v767 = vadd.f32 %v744, %v765
        %vm768 = vcmp.ge.s32.totalorder %v332, 1
        %vm769 = vcmp.ge.s32.totalorder %v333, 1
        %vm770 = vcmp.lt.s32.totalorder %v332, 17
        %vm771 = vcmp.lt.s32.totalorder %v333, 17
        %vm772 = vmand %vm768, %vm770
        %vm773 = vmand %vm769, %vm771
        %v775 = vperm.slane %v767, 0
        %v776 = vperm.slane %v767, 2
        %v777 = vperm.slane %v767, 4
        %778 = vrot.lane.b32.xlu0 %v775, 49
        %v779 = vpop.permute.xlu0 %778
        %780 = vrot.lane.b32.xlu0 %v776, 49
        %v781 = vpop.permute.xlu0 %780
        %782 = vrot.lane.b32.xlu0 %v777, 49
        %v783 = vpop.permute.xlu0 %782
        %vm784 = vcmask 400384
        %v785 = vsel %vm784, %v779, %v781
        %v786 = vsel %vm784, %v781, %v783
        %v789 = vsel %vm772, %v785, 0.0
        %v790 = vsel %vm773, %v786, 0.0
        %v791 = vstv %s212
        %v792 = vmul.f32 %v791, %v208
        %v793 = vstv %s261
        %v794 = vmul.f32 %v793, %v208
        %v796 = vrot.slane %v794, 7
        %v797 = vrot.slane %v796, 2
        %v799 = vadd.f32 %v792, %v797
        %v800 = vadd.f32 %v799, 0.0
        %v801 = vstv %s219
        %v802 = vmul.f32 %v801, %v208
        %v803 = vstv %s268
        %v804 = vmul.f32 %v803, %v208
        %v806 = vrot.slane %v804, 7
        %v807 = vrot.slane %v806, 2
        %v809 = vadd.f32 %v802, %v807
        %811 = vrot.lane.b32.xlu0 %v809, 112
        %v812 = vpop.permute.xlu0 %811
        %v813 = vrot.slane %v812, 2
        %v814 = vsel %vm357, %v812, %v813
        %v816 = vadd.f32 %v800, %v814
        %v817 = vstv %s226
        %v818 = vmul.f32 %v817, %v208
        %v819 = vstv %s275
        %v820 = vmul.f32 %v819, %v208
        %v822 = vrot.slane %v820, 7
        %v823 = vrot.slane %v822, 2
        %v825 = vadd.f32 %v818, %v823
        %827 = vrot.lane.b32.xlu0 %v825, 96
        %v828 = vpop.permute.xlu0 %827
        %v829 = vrot.slane %v828, 2
        %v830 = vsel %vm374, %v828, %v829
        %v832 = vadd.f32 %v816, %v830
        %v833 = vstv %s233
        %v834 = vrot.slane %v208, 2
        %v836 = vmul.f32 %v833, %v834
        %v837 = vstv %s282
        %v838 = vmul.f32 %v837, %v834
        %v840 = vrot.slane %v838, 7
        %v841 = vrot.slane %v840, 2
        %v843 = vadd.f32 %v836, %v841
        %845 = vrot.lane.b32.xlu0 %v843, 80
        %v846 = vpop.permute.xlu0 %845
        %v847 = vrot.slane %v846, 6
        %v848 = vsel %vm391, %v847, %v846
        %v850 = vadd.f32 %v832, %v848
        %v851 = vstv %s240
        %852 = vrot.lane.b32.xlu0 %v208, 112
        %v853 = vpop.permute.xlu0 %852
        %v854 = vrot.slane %v853, 2
        %v855 = vrot.slane %v853, 4
        %v856 = vsel %vm357, %v854, %v855
        %v858 = vmul.f32 %v851, %v856
        %v859 = vstv %s289
        %v860 = vmul.f32 %v859, %v856
        %v862 = vrot.slane %v860, 7
        %v863 = vrot.slane %v862, 2
        %v865 = vadd.f32 %v858, %v863
        %867 = vrot.lane.b32.xlu0 %v865, 80
        %v868 = vpop.permute.xlu0 %867
        %v869 = vrot.slane %v868, 6
        %v870 = vsel %vm391, %v869, %v868
        %v872 = vadd.f32 %v850, %v870
        %v873 = vstv %s247
        %874 = vrot.lane.b32.xlu0 %v208, 96
        %v875 = vpop.permute.xlu0 %874
        %v876 = vrot.slane %v875, 2
        %v877 = vrot.slane %v875, 4
        %v878 = vsel %vm374, %v876, %v877
        %v880 = vmul.f32 %v873, %v878
        %v881 = vstv %s296
        %v882 = vmul.f32 %v881, %v878
        %v884 = vrot.slane %v882, 7
        %v885 = vrot.slane %v884, 2
        %v887 = vadd.f32 %v880, %v885
        %889 = vrot.lane.b32.xlu0 %v887, 80
        %v890 = vpop.permute.xlu0 %889
        %v891 = vrot.slane %v890, 6
        %v892 = vsel %vm391, %v891, %v890
        %v894 = vadd.f32 %v872, %v892
        %v895 = vstv %s254
        %896 = vrot.lane.b32.xlu0 %v208, 80
        %v897 = vpop.permute.xlu0 %896
        %v898 = vrot.slane %v897, 2
        %v899 = vrot.slane %v897, 4
        %v900 = vsel %vm391, %v898, %v899
        %v902 = vmul.f32 %v895, %v900
        %v903 = vstv %s303
        %v904 = vmul.f32 %v903, %v900
        %v906 = vrot.slane %v904, 7
        %v907 = vrot.slane %v906, 2
        %v909 = vadd.f32 %v902, %v907
        %911 = vrot.lane.b32.xlu0 %v909, 80
        %v912 = vpop.permute.xlu0 %911
        %v913 = vrot.slane %v912, 6
        %v914 = vsel %vm391, %v913, %v912
        %v916 = vadd.f32 %v894, %v914
        %vm917 = vcmp.ge.s32.totalorder %v332, 0
        %vm918 = vcmp.ge.s32.totalorder %v333, 0
        %vm919 = vcmp.lt.s32.totalorder %v332, 16
        %vm920 = vcmp.lt.s32.totalorder %v333, 16
        %vm921 = vmand %vm917, %vm919
        %vm922 = vmand %vm918, %vm920
        %v924 = vperm.slane %v916, 0
        %v925 = vperm.slane %v916, 2
        %v926 = vperm.slane %v916, 4
        %927 = vrot.lane.b32.xlu0 %v924, 48
        %v928 = vpop.permute.xlu0 %927
        %929 = vrot.lane.b32.xlu0 %v925, 48
        %v930 = vpop.permute.xlu0 %929
        %931 = vrot.lane.b32.xlu0 %v926, 48
        %v932 = vpop.permute.xlu0 %931
        %vm933 = vcmask 392192
        %v934 = vsel %vm933, %v928, %v930
        %v935 = vsel %vm933, %v930, %v932
        %v938 = vsel %vm921, %v934, 0.0
        %v939 = vsel %vm922, %v935, 0.0
        %v940 = vstv %s213
        %v941 = vmul.f32 %v940, %v208
        %v942 = vstv %s262
        %v943 = vmul.f32 %v942, %v208
        %v945 = vrot.slane %v943, 7
        %v946 = vrot.slane %v945, 2
        %v948 = vadd.f32 %v941, %v946
        %v949 = vadd.f32 %v948, 0.0
        %v950 = vstv %s220
        %v951 = vmul.f32 %v950, %v208
        %v952 = vstv %s269
        %v953 = vmul.f32 %v952, %v208
        %v955 = vrot.slane %v953, 7
        %v956 = vrot.slane %v955, 2
        %v958 = vadd.f32 %v951, %v956
        %960 = vrot.lane.b32.xlu0 %v958, 112
        %v961 = vpop.permute.xlu0 %960
        %v962 = vrot.slane %v961, 2
        %v963 = vsel %vm357, %v961, %v962
        %v965 = vadd.f32 %v949, %v963
        %v966 = vstv %s227
        %v967 = vmul.f32 %v966, %v208
        %v968 = vstv %s276
        %v969 = vmul.f32 %v968, %v208
        %v971 = vrot.slane %v969, 7
        %v972 = vrot.slane %v971, 2
        %v974 = vadd.f32 %v967, %v972
        %976 = vrot.lane.b32.xlu0 %v974, 96
        %v977 = vpop.permute.xlu0 %976
        %v978 = vrot.slane %v977, 2
        %v979 = vsel %vm374, %v977, %v978
        %v981 = vadd.f32 %v965, %v979
        %v982 = vstv %s234
        %983 = vrot.lane.b32.xlu0 %v208, 127
        %v984 = vpop.permute.xlu0 %983
        %v985 = vrot.slane %v984, 2
        %v986 = vrot.slane %v984, 4
        %vm987 = vcmask 1039360
        %v988 = vsel %vm987, %v985, %v986
        %v990 = vmul.f32 %v982, %v988
        %v991 = vstv %s283
        %v992 = vmul.f32 %v991, %v988
        %v994 = vrot.slane %v992, 7
        %v995 = vrot.slane %v994, 2
        %v997 = vadd.f32 %v990, %v995
        %999 = vrot.lane.b32.xlu0 %v997, 81
        %v1000 = vpop.permute.xlu0 %999
        %v1001 = vrot.slane %v1000, 6
        %v1002 = vsel %vm750, %v1001, %v1000
        %v1004 = vadd.f32 %v981, %v1002
        %v1005 = vstv %s241
        %1006 = vrot.lane.b32.xlu0 %v208, 111
        %v1007 = vpop.permute.xlu0 %1006
        %v1008 = vrot.slane %v1007, 2
        %v1009 = vrot.slane %v1007, 4
        %vm1010 = vcmask 908288
        %v1011 = vsel %vm1010, %v1008, %v1009
        %v1013 = vmul.f32 %v1005, %v1011
        %v1014 = vstv %s290
        %v1015 = vmul.f32 %v1014, %v1011
        %v1017 = vrot.slane %v1015, 7
        %v1018 = vrot.slane %v1017, 2
        %v1020 = vadd.f32 %v1013, %v1018
        %1022 = vrot.lane.b32.xlu0 %v1020, 81
        %v1023 = vpop.permute.xlu0 %1022
        %v1024 = vrot.slane %v1023, 6
        %v1025 = vsel %vm750, %v1024, %v1023
        %v1027 = vadd.f32 %v1004, %v1025
        %v1028 = vstv %s248
        %1029 = vrot.lane.b32.xlu0 %v208, 95
        %v1030 = vpop.permute.xlu0 %1029
        %v1031 = vrot.slane %v1030, 2
        %v1032 = vrot.slane %v1030, 4
        %vm1033 = vcmask 777216
        %v1034 = vsel %vm1033, %v1031, %v1032
        %v1036 = vmul.f32 %v1028, %v1034
        %v1037 = vstv %s297
        %v1038 = vmul.f32 %v1037, %v1034
        %v1040 = vrot.slane %v1038, 7
        %v1041 = vrot.slane %v1040, 2
        %v1043 = vadd.f32 %v1036, %v1041
        %1045 = vrot.lane.b32.xlu0 %v1043, 81
        %v1046 = vpop.permute.xlu0 %1045
        %v1047 = vrot.slane %v1046, 6
        %v1048 = vsel %vm750, %v1047, %v1046
        %v1050 = vadd.f32 %v1027, %v1048
        %v1051 = vstv %s255
        %1052 = vrot.lane.b32.xlu0 %v208, 79
        %v1053 = vpop.permute.xlu0 %1052
        %v1054 = vrot.slane %v1053, 2
        %v1055 = vrot.slane %v1053, 4
        %v1056 = vsel %vm718, %v1054, %v1055
        %v1058 = vmul.f32 %v1051, %v1056
        %v1059 = vstv %s304
        %v1060 = vmul.f32 %v1059, %v1056
        %v1062 = vrot.slane %v1060, 7
        %v1063 = vrot.slane %v1062, 2
        %v1065 = vadd.f32 %v1058, %v1063
        %1067 = vrot.lane.b32.xlu0 %v1065, 81
        %v1068 = vpop.permute.xlu0 %1067
        %v1069 = vrot.slane %v1068, 6
        %v1070 = vsel %vm750, %v1069, %v1068
        %v1072 = vadd.f32 %v1050, %v1070
        %vm1073 = vcmp.ge.s32.totalorder %v332, 4294967295
        %vm1074 = vcmp.ge.s32.totalorder %v333, 4294967295
        %vm1075 = vcmp.lt.s32.totalorder %v332, 15
        %vm1076 = vcmp.lt.s32.totalorder %v333, 15
        %vm1077 = vmand %vm1073, %vm1075
        %vm1078 = vmand %vm1074, %vm1076
        %v1080 = vperm.slane %v1072, 0
        %v1081 = vperm.slane %v1072, 2
        %v1082 = vperm.slane %v1072, 4
        %1083 = vrot.lane.b32.xlu0 %v1080, 47
        %v1084 = vpop.permute.xlu0 %1083
        %1085 = vrot.lane.b32.xlu0 %v1081, 47
        %v1086 = vpop.permute.xlu0 %1085
        %1087 = vrot.lane.b32.xlu0 %v1082, 47
        %v1088 = vpop.permute.xlu0 %1087
        %vm1089 = vcmask 384000
        %v1090 = vsel %vm1089, %v1084, %v1086
        %v1091 = vsel %vm1089, %v1086, %v1088
        %v1094 = vsel %vm1077, %v1090, 0.0
        %v1095 = vsel %vm1078, %v1091, 0.0
        %v1096 = vstv %s214
        %v1097 = vmul.f32 %v1096, %v208
        %v1098 = vstv %s263
        %v1099 = vmul.f32 %v1098, %v208
        %v1101 = vrot.slane %v1099, 7
        %v1102 = vrot.slane %v1101, 2
        %v1104 = vadd.f32 %v1097, %v1102
        %v1105 = vadd.f32 %v1104, 0.0
        %v1106 = vstv %s221
        %v1107 = vmul.f32 %v1106, %v208
        %v1108 = vstv %s270
        %v1109 = vmul.f32 %v1108, %v208
        %v1111 = vrot.slane %v1109, 7
        %v1112 = vrot.slane %v1111, 2
        %v1114 = vadd.f32 %v1107, %v1112
        %1116 = vrot.lane.b32.xlu0 %v1114, 112
        %v1117 = vpop.permute.xlu0 %1116
        %v1118 = vrot.slane %v1117, 2
        %v1119 = vsel %vm357, %v1117, %v1118
        %v1121 = vadd.f32 %v1105, %v1119
        %v1122 = vstv %s228
        %v1123 = vmul.f32 %v1122, %v208
        %v1124 = vstv %s277
        %v1125 = vmul.f32 %v1124, %v208
        %v1127 = vrot.slane %v1125, 7
        %v1128 = vrot.slane %v1127, 2
        %v1130 = vadd.f32 %v1123, %v1128
        %1132 = vrot.lane.b32.xlu0 %v1130, 96
        %v1133 = vpop.permute.xlu0 %1132
        %v1134 = vrot.slane %v1133, 2
        %v1135 = vsel %vm374, %v1133, %v1134
        %v1137 = vadd.f32 %v1121, %v1135
        %v1138 = vstv %s235
        %1139 = vrot.lane.b32.xlu0 %v208, 126
        %v1140 = vpop.permute.xlu0 %1139
        %v1141 = vrot.slane %v1140, 2
        %v1142 = vrot.slane %v1140, 4
        %vm1143 = vcmask 1031168
        %v1144 = vsel %vm1143, %v1141, %v1142
        %v1146 = vmul.f32 %v1138, %v1144
        %v1147 = vstv %s284
        %v1148 = vmul.f32 %v1147, %v1144
        %v1150 = vrot.slane %v1148, 7
        %v1151 = vrot.slane %v1150, 2
        %v1153 = vadd.f32 %v1146, %v1151
        %1155 = vrot.lane.b32.xlu0 %v1153, 82
        %v1156 = vpop.permute.xlu0 %1155
        %v1157 = vrot.slane %v1156, 6
        %v1158 = vsel %vm599, %v1157, %v1156
        %v1160 = vadd.f32 %v1137, %v1158
        %v1161 = vstv %s242
        %1162 = vrot.lane.b32.xlu0 %v208, 110
        %v1163 = vpop.permute.xlu0 %1162
        %v1164 = vrot.slane %v1163, 2
        %v1165 = vrot.slane %v1163, 4
        %vm1166 = vcmask 900096
        %v1167 = vsel %vm1166, %v1164, %v1165
        %v1169 = vmul.f32 %v1161, %v1167
        %v1170 = vstv %s291
        %v1171 = vmul.f32 %v1170, %v1167
        %v1173 = vrot.slane %v1171, 7
        %v1174 = vrot.slane %v1173, 2
        %v1176 = vadd.f32 %v1169, %v1174
        %1178 = vrot.lane.b32.xlu0 %v1176, 82
        %v1179 = vpop.permute.xlu0 %1178
        %v1180 = vrot.slane %v1179, 6
        %v1181 = vsel %vm599, %v1180, %v1179
        %v1183 = vadd.f32 %v1160, %v1181
        %v1184 = vstv %s249
        %1185 = vrot.lane.b32.xlu0 %v208, 94
        %v1186 = vpop.permute.xlu0 %1185
        %v1187 = vrot.slane %v1186, 2
        %v1188 = vrot.slane %v1186, 4
        %vm1189 = vcmask 769024
        %v1190 = vsel %vm1189, %v1187, %v1188
        %v1192 = vmul.f32 %v1184, %v1190
        %v1193 = vstv %s298
        %v1194 = vmul.f32 %v1193, %v1190
        %v1196 = vrot.slane %v1194, 7
        %v1197 = vrot.slane %v1196, 2
        %v1199 = vadd.f32 %v1192, %v1197
        %1201 = vrot.lane.b32.xlu0 %v1199, 82
        %v1202 = vpop.permute.xlu0 %1201
        %v1203 = vrot.slane %v1202, 6
        %v1204 = vsel %vm599, %v1203, %v1202
        %v1206 = vadd.f32 %v1183, %v1204
        %v1207 = vstv %s256
        %1208 = vrot.lane.b32.xlu0 %v208, 78
        %v1209 = vpop.permute.xlu0 %1208
        %v1210 = vrot.slane %v1209, 2
        %v1211 = vrot.slane %v1209, 4
        %v1212 = vsel %vm567, %v1210, %v1211
        %v1214 = vmul.f32 %v1207, %v1212
        %v1215 = vstv %s305
        %v1216 = vmul.f32 %v1215, %v1212
        %v1218 = vrot.slane %v1216, 7
        %v1219 = vrot.slane %v1218, 2
        %v1221 = vadd.f32 %v1214, %v1219
        %1223 = vrot.lane.b32.xlu0 %v1221, 82
        %v1224 = vpop.permute.xlu0 %1223
        %v1225 = vrot.slane %v1224, 6
        %v1226 = vsel %vm599, %v1225, %v1224
        %v1228 = vadd.f32 %v1206, %v1226
        %vm1229 = vcmp.ge.s32.totalorder %v332, 4294967294
        %vm1230 = vcmp.ge.s32.totalorder %v333, 4294967294
        %vm1231 = vcmp.lt.s32.totalorder %v332, 14
        %vm1232 = vcmp.lt.s32.totalorder %v333, 14
        %vm1233 = vmand %vm1229, %vm1231
        %vm1234 = vmand %vm1230, %vm1232
        %v1236 = vperm.slane %v1228, 0
        %v1237 = vperm.slane %v1228, 2
        %v1238 = vperm.slane %v1228, 4
        %1239 = vrot.lane.b32.xlu0 %v1236, 46
        %v1240 = vpop.permute.xlu0 %1239
        %1241 = vrot.lane.b32.xlu0 %v1237, 46
        %v1242 = vpop.permute.xlu0 %1241
        %1243 = vrot.lane.b32.xlu0 %v1238, 46
        %v1244 = vpop.permute.xlu0 %1243
        %vm1245 = vcmask 375808
        %v1246 = vsel %vm1245, %v1240, %v1242
        %v1247 = vsel %vm1245, %v1242, %v1244
        %v1250 = vsel %vm1233, %v1246, 0.0
        %v1251 = vsel %vm1234, %v1247, 0.0
        %v1252 = vstv %s215
        %v1253 = vmul.f32 %v1252, %v208
        %v1254 = vstv %s264
        %v1255 = vmul.f32 %v1254, %v208
        %v1257 = vrot.slane %v1255, 7
        %v1258 = vrot.slane %v1257, 2
        %v1260 = vadd.f32 %v1253, %v1258
        %v1261 = vadd.f32 %v1260, 0.0
        %v1262 = vstv %s222
        %v1263 = vmul.f32 %v1262, %v208
        %v1264 = vstv %s271
        %v1265 = vmul.f32 %v1264, %v208
        %v1267 = vrot.slane %v1265, 7
        %v1268 = vrot.slane %v1267, 2
        %v1270 = vadd.f32 %v1263, %v1268
        %1272 = vrot.lane.b32.xlu0 %v1270, 112
        %v1273 = vpop.permute.xlu0 %1272
        %v1274 = vrot.slane %v1273, 2
        %v1275 = vsel %vm357, %v1273, %v1274
        %v1277 = vadd.f32 %v1261, %v1275
        %v1278 = vstv %s229
        %v1279 = vmul.f32 %v1278, %v208
        %v1280 = vstv %s278
        %v1281 = vmul.f32 %v1280, %v208
        %v1283 = vrot.slane %v1281, 7
        %v1284 = vrot.slane %v1283, 2
        %v1286 = vadd.f32 %v1279, %v1284
        %1288 = vrot.lane.b32.xlu0 %v1286, 96
        %v1289 = vpop.permute.xlu0 %1288
        %v1290 = vrot.slane %v1289, 2
        %v1291 = vsel %vm374, %v1289, %v1290
        %v1293 = vadd.f32 %v1277, %v1291
        %v1294 = vstv %s236
        %1295 = vrot.lane.b32.xlu0 %v208, 125
        %v1296 = vpop.permute.xlu0 %1295
        %v1297 = vrot.slane %v1296, 2
        %v1298 = vrot.slane %v1296, 4
        %vm1299 = vcmask 1022976
        %v1300 = vsel %vm1299, %v1297, %v1298
        %v1302 = vmul.f32 %v1294, %v1300
        %v1303 = vstv %s285
        %v1304 = vmul.f32 %v1303, %v1300
        %v1306 = vrot.slane %v1304, 7
        %v1307 = vrot.slane %v1306, 2
        %v1309 = vadd.f32 %v1302, %v1307
        %1311 = vrot.lane.b32.xlu0 %v1309, 83
        %v1312 = vpop.permute.xlu0 %1311
        %v1313 = vrot.slane %v1312, 6
        %v1314 = vsel %vm448, %v1313, %v1312
        %v1316 = vadd.f32 %v1293, %v1314
        %v1317 = vstv %s243
        %1318 = vrot.lane.b32.xlu0 %v208, 109
        %v1319 = vpop.permute.xlu0 %1318
        %v1320 = vrot.slane %v1319, 2
        %v1321 = vrot.slane %v1319, 4
        %vm1322 = vcmask 891904
        %v1323 = vsel %vm1322, %v1320, %v1321
        %v1325 = vmul.f32 %v1317, %v1323
        %v1326 = vstv %s292
        %v1327 = vmul.f32 %v1326, %v1323
        %v1329 = vrot.slane %v1327, 7
        %v1330 = vrot.slane %v1329, 2
        %v1332 = vadd.f32 %v1325, %v1330
        %1334 = vrot.lane.b32.xlu0 %v1332, 83
        %v1335 = vpop.permute.xlu0 %1334
        %v1336 = vrot.slane %v1335, 6
        %v1337 = vsel %vm448, %v1336, %v1335
        %v1339 = vadd.f32 %v1316, %v1337
        %v1340 = vstv %s250
        %1341 = vrot.lane.b32.xlu0 %v208, 93
        %v1342 = vpop.permute.xlu0 %1341
        %v1343 = vrot.slane %v1342, 2
        %v1344 = vrot.slane %v1342, 4
        %vm1345 = vcmask 760832
        %v1346 = vsel %vm1345, %v1343, %v1344
        %v1348 = vmul.f32 %v1340, %v1346
        %v1349 = vstv %s299
        %v1350 = vmul.f32 %v1349, %v1346
        %v1352 = vrot.slane %v1350, 7
        %v1353 = vrot.slane %v1352, 2
        %v1355 = vadd.f32 %v1348, %v1353
        %1357 = vrot.lane.b32.xlu0 %v1355, 83
        %v1358 = vpop.permute.xlu0 %1357
        %v1359 = vrot.slane %v1358, 6
        %v1360 = vsel %vm448, %v1359, %v1358
        %v1362 = vadd.f32 %v1339, %v1360
        %v1363 = vstv %s257
        %1364 = vrot.lane.b32.xlu0 %v208, 77
        %v1365 = vpop.permute.xlu0 %1364
        %v1366 = vrot.slane %v1365, 2
        %v1367 = vrot.slane %v1365, 4
        %v1368 = vsel %vm416, %v1366, %v1367
        %v1370 = vmul.f32 %v1363, %v1368
        %v1371 = vstv %s306
        %v1372 = vmul.f32 %v1371, %v1368
        %v1374 = vrot.slane %v1372, 7
        %v1375 = vrot.slane %v1374, 2
        %v1377 = vadd.f32 %v1370, %v1375
        %1379 = vrot.lane.b32.xlu0 %v1377, 83
        %v1380 = vpop.permute.xlu0 %1379
        %v1381 = vrot.slane %v1380, 6
        %v1382 = vsel %vm448, %v1381, %v1380
        %v1384 = vadd.f32 %v1362, %v1382
        %vm1385 = vcmp.ge.s32.totalorder %v332, 4294967293
        %vm1386 = vcmp.ge.s32.totalorder %v333, 4294967293
        %vm1387 = vcmp.lt.s32.totalorder %v332, 13
        %vm1388 = vcmp.lt.s32.totalorder %v333, 13
        %vm1389 = vmand %vm1385, %vm1387
        %vm1390 = vmand %vm1386, %vm1388
        %v1392 = vperm.slane %v1384, 0
        %v1393 = vperm.slane %v1384, 2
        %v1394 = vperm.slane %v1384, 4
        %1395 = vrot.lane.b32.xlu0 %v1392, 45
        %v1396 = vpop.permute.xlu0 %1395
        %1397 = vrot.lane.b32.xlu0 %v1393, 45
        %v1398 = vpop.permute.xlu0 %1397
        %1399 = vrot.lane.b32.xlu0 %v1394, 45
        %v1400 = vpop.permute.xlu0 %1399
        %vm1401 = vcmask 367616
        %v1402 = vsel %vm1401, %v1396, %v1398
        %v1403 = vsel %vm1401, %v1398, %v1400
        %v1406 = vsel %vm1389, %v1402, 0.0
        %v1407 = vsel %vm1390, %v1403, 0.0
        %v1408 = vadd.f32 %v487, %v638
        %v1409 = vadd.f32 %v488, %v639
        %v1410 = vadd.f32 %v789, %v938
        %v1411 = vadd.f32 %v790, %v939
        %v1412 = vadd.f32 %v1094, %v1250
        %v1413 = vadd.f32 %v1095, %v1251
        %v1414 = vadd.f32 %v1408, %v1410
        %v1415 = vadd.f32 %v1409, %v1411
        %v1416 = vadd.f32 %v1412, %v1406
        %v1417 = vadd.f32 %v1413, %v1407
        %v1418 = vadd.f32 %v1414, %v1416
        %v1419 = vadd.f32 %v1415, %v1417
        %v1420 = vxor.u32 %v1418, 2147483648
        %v1421 = vxor.u32 %v1419, 2147483648
        %v1422 = vmul.f32 %v1420, 1.442695
        %v1423 = vpow.pop %v1422
        %v1424 = vmul.f32 %v1421, 1.442695
        %v1425 = vpow.pop %v1424
        %v1426 = vadd.f32 %v1423, 1.0
        %v1427 = vadd.f32 %v1425, 1.0
        %v1428 = vrcp.pop %v1426
        %v1429 = vmul.f32 %v1426, %v1428
        %v1430 = vsub.f32 1.0, %v1429
        %v1431 = vmul.f32 %v1428, %v1430
        %v1432 = vadd.f32 %v1428, %v1431
        %vm1433 = vweird.f32 %v1426
        %vm1434 = vweird.f32 %v1428
        %vm1435 = vmor %vm1433, %vm1434
        %v1436 = vsel %vm1435, %v1428, %v1432
        %v1437 = vand.u32 2147483647, %v1426
        %vm1438 = vcmp.eq.f32.partialorder %v1437, 8.507059e+37
        %v1439 = vand.u32 %v1426, 2147483648
        %v1440 = vor.u32 1.1754944e-38, %v1439
        %v1441 = vsel %vm1438, %v1440, %v1436
        %v1442 = vmul.f32 1.0, %v1441
        %v1443 = vrcp.pop %v1427
        %v1444 = vmul.f32 %v1427, %v1443
        %v1445 = vsub.f32 1.0, %v1444
        %v1446 = vmul.f32 %v1443, %v1445
        %v1447 = vadd.f32 %v1443, %v1446
        %vm1448 = vweird.f32 %v1427
        %vm1449 = vweird.f32 %v1443
        %vm1450 = vmor %vm1448, %vm1449
        %v1451 = vsel %vm1450, %v1443, %v1447
        %v1452 = vand.u32 2147483647, %v1427
        %vm1453 = vcmp.eq.f32.partialorder %v1452, 8.507059e+37
        %v1454 = vand.u32 %v1427, 2147483648
        %v1455 = vor.u32 1.1754944e-38, %v1454
        %v1456 = vsel %vm1453, %v1455, %v1451
        %v1457 = vmul.f32 1.0, %v1456
        %v1458 = vperm.slane %v1442, 0
        %v1459 = vperm.slane %v1457, 0
        %v1462 = vrot.slane %v1459, 4
        %v1463 = vsel %vm151, %v1458, %v1462
        %v1465 = vmul.f32 %v144, %v1463
        %1466 = vst [vmem:[%s143] sm:$0xff] %v1465
        %s1467 = sand.u32 %s61, 1
        %s1468 = scalar_lea.sflag [#allocation7], %s1467
        %s1469 = sand.u32 %s61, 1
        %s1470 = smul.addr %s1469, 8
        %s1471 = scalar_lea.vmem [#allocation8], %s1470
        // Predicated region
        $region29: #{tpu_custom_call.1} parent=23 // pred_check
          %p1472 = pneg %p71
        $region30: #{tpu_custom_call.1} parent=23 // pred_check_branch
          %1474 = sbr.rel (%p1472) target = $region32
        $region31: #{tpu_custom_call.1} parent=23 // pred_region
          %1476 = vsyncadd %s1468, 0
          %s1477 = smul.addr %s27, 2
          %s1478 = smul.addr %s1477, 4
          %s1479 = scalar_lea.hbm %s2, %s1478
          %s1481 = sshll.u32 %s1471, 4
          %s1482 = int_to_ptr.vmem [resolvable:$true] %s1481
          %s1483 = sshll.u32 %s1479, 4
          %s1484 = int_to_ptr.hbm [resolvable:$true] %s1483
          %1486 = dma.vmem_to_hbm [thread:$0]  %s1482, 128, %s1484, %s1468
        $region32: #{tpu_custom_call.1} parent=23 // pred_fallthru
          _
      $region24: #{tpu_custom_call.1} parent=5 // pred_fallthru
        _
      %p1487 = scmp.le.s32.totalorder 2, %s22
      // Predicated region
      $region33: #{tpu_custom_call.1} parent=5 // pred_check
        %p1488 = pneg %p1487
      $region34: #{tpu_custom_call.1} parent=5 // pred_check_branch
        %1490 = sbr.rel (%p1488) target = $region36
      $region35: #{tpu_custom_call.1} parent=5 // pred_region
        %s1491 = ssub.s32 %s22, 2
        // Predicated region
        $region37: #{tpu_custom_call.1} parent=35 // pred_check
          %p1492 = pneg %p77
        $region38: #{tpu_custom_call.1} parent=35 // pred_check_branch
          %1494 = sbr.rel (%p1492) target = $region40
        $region39: #{tpu_custom_call.1} parent=35 // pred_region
          %s1495 = sand.u32 %s62, 1
          %s1496 = scalar_lea.sflag [#allocation7], %s1495
          %s1497 = sand.u32 %s62, 1
          %s1498 = smul.addr %s1497, 8
          %s1499 = scalar_lea.vmem [#allocation8], %s1498
          %1501 = dma.done %s1496, 128
        $region40: #{tpu_custom_call.1} parent=35 // pred_fallthru
          _
      $region36: #{tpu_custom_call.1} parent=5 // pred_fallthru
        _
    $region6: #{tpu_custom_call.1} parent=1 // loop_footer
      %s26 = sadd.s32 1, %s22
    $region7: #{tpu_custom_call.1} parent=1 // loop_footer_branch
      %21 = sbr.rel target = $region3
    $region8: #{tpu_custom_call.1} parent=1 // loop_exit
      _
    %1502 = vsyncpa [#allocation6], 1
    %s1503 = scalar_lea.sflag [#allocation6], 1
    %1504 = vsyncpa %s1503, 1
    %1505 = vsyncpa [#allocation7], 1
    %s1506 = scalar_lea.sflag [#allocation7], 1
    %1507 = vsyncpa %s1506, 1

</llo_original>
